<compile_context>
chip_gen: v7x
topology: tpu7x:2x2x1
jax: 0.10.0
libtpu: 0.0.40
codegen_flags: <defaults>
</compile_context>

<pallas_src>
import jax
import jax.numpy as jnp
from jax.experimental import pallas as pl
from jax.experimental.pallas import tpu as pltpu

_K = 5                 # conv kernel size
_KK = _K * _K          # 25 taps
_KAUG = _KK + 1        # taps + ones row (folds BN shift / pixel count into the matmul)
_EPS = 1e-5            # BatchNorm2d default eps


def _build_patch(xs_ref, patch_ref, nb, H, W):
    """In-VMEM im2col, taps-outer: one contiguous full-row write per (tap, image).

    xs_ref    : [NB, 5, (H+4)*W]  5 horizontally pre-shifted, vertically padded,
                                  row-flattened copies of each image.
    patch_ref : [26, NB*H*W]      rows 0..24 = taps (k = di*5 + dj), row 25 = 1.
    """
    HW = H * W
    for b in range(nb):
        for di in range(_K):
            for dj in range(_K):
                k = di * _K + dj
                # patch[k, b*HW + r*W + j] = xpad[b, r + di, j + dj]
                #                          = xs[b, dj, di*W + (r*W + j)]
                patch_ref[k:k + 1, b * HW:(b + 1) * HW] = (
                    xs_ref[b, dj:dj + 1, di * W:di * W + HW])
    # Augmentation row of ones: gives per-tap sums / pixel count in the Gram
    # (phase 1) and carries the BN shift in the folded weights (phase 2).
    patch_ref[_KK:_KAUG, :] = jnp.ones((1, nb * HW), jnp.float32)


def _make_stats_kernel(nb, H, W):
    """Phase 1: augmented patch Gram (all BN statistics, no conv writeback)."""
    def kernel(xs_ref, g_ref, patch_ref):
        _build_patch(xs_ref, patch_ref, nb, H, W)
        p = patch_ref[...]                                   # [26, NB*H*W]
        g_ref[0] = jax.lax.dot_general(
            p, p, (((1,), (1,)), ((), ())),                  # P @ P.T on the MXU
            preferred_element_type=jnp.float32)
    return kernel


def _make_apply_kernel(nb, H, W):
    """Phase 2: conv + BN apply fused into one matmul, lane-dense output."""
    HW = H * W

    def kernel(xs_ref, w_ref, out_ref, patch_ref):
        _build_patch(xs_ref, patch_ref, nb, H, W)
        # w_ref[:, :25] = scale_c * conv weights, w_ref[:, 25] = BN shift_c.
        res = jnp.dot(w_ref[...], patch_ref[...],
                      preferred_element_type=jnp.float32)    # [OC, NB*H*W]
        for b in range(nb):
            out_ref[b] = res[:, b * HW:(b + 1) * HW]
    return kernel


def _pick_images_per_step(N, HW, OC):
    """Fold whole images into the lane axis; keep >=2 grid steps for v7x."""
    target_lanes = 2048                    # amortize ~0.35 us per-grid-step overhead
    vmem_budget = 8 * 1024 * 1024          # per-step working-set cap (f32)
    best = 1
    for nb in range(1, N + 1):
        if N % nb:
            continue
        if N >= 2 and N // nb < 2:         # keep both v7x TensorCores busy
            break
        per_step_bytes = 4 * nb * HW * (2 * OC + _KAUG + 2 * _K + 8)
        if per_step_bytes > vmem_budget:
            break
        best = nb
        if nb * HW >= target_lanes:
            break
    return best
    # TODO(synk): row-tile very large images (whole-image blocks assumed to fit VMEM).


@jax.jit
def conv_bn_forward(x_nchw, weight, bias, gamma, beta):
    """x_nchw: [N, 1, H, W] f32 -> [N, 16, H, W] f32 (Conv2d(1,16,5,p=2) + BN)."""
    del bias  # cancels exactly under training-mode BatchNorm (see header note)
    N, C, H, W = x_nchw.shape
    assert C == 1, "module is Conv2d(1, 16, ...)"
    OC = weight.shape[0]
    HW = H * W
    Hpv = H + 2 * (_K // 2)                # vertically padded height

    nb = _pick_images_per_step(N, HW, OC)
    n_steps = N // nb

    # ---- wrapper-side glue (O(5 x input), O(weights)) -----------------------
    xpad = jnp.pad(x_nchw[:, 0].astype(jnp.float32), ((0, 0), (2, 2), (2, 2)))
    # 5 horizontally shifted copies with rows flattened onto the lane axis:
    # the in-kernel patch row for tap (di, dj) is then ONE contiguous slice.
    xs = jnp.stack([xpad[:, :, dj:dj + W] for dj in range(_K)], axis=1)
    xs = xs.reshape(N, _K, Hpv * W)                                  # [N, 5, (H+4)*W]

    w25 = weight[:, 0].astype(jnp.float32).reshape(OC, _KK)          # k = di*5 + dj

    # VMEM limit derived from the real working set (double-buffered blocks +
    # scratch), with 4x headroom, kept under v7x's 64 MiB physical VMEM.
    xs_blk = nb * _K * Hpv * W * 4
    out_blk = nb * OC * HW * 4
    patch_scr = _KAUG * nb * HW * 4
    est = 2 * (xs_blk + out_blk + OC * _KAUG * 4 + _KAUG * _KAUG * 4) + patch_scr
    vmem_limit = int(min(60 * 1024 * 1024, max(4 * 1024 * 1024, 4 * est)))
    cparams = pltpu.CompilerParams(dimension_semantics=("parallel",),
                                   vmem_limit_bytes=vmem_limit)

    # ---- phase 1: per-step augmented Gram matrices --------------------------
    g_steps = pl.pallas_call(
        _make_stats_kernel(nb, H, W),
        out_shape=jax.ShapeDtypeStruct((n_steps, _KAUG, _KAUG), jnp.float32),
        grid=(n_steps,),
        in_specs=[pl.BlockSpec((nb, _K, Hpv * W), lambda i: (i, 0, 0))],
        out_specs=pl.BlockSpec((1, _KAUG, _KAUG), lambda i: (i, 0, 0)),
        scratch_shapes=[pltpu.VMEM((_KAUG, nb * HW), jnp.float32)],
        compiler_params=cparams,
    )(xs)

    # ---- tiny XLA reduction: Gram -> per-channel scale/shift ----------------
    G = jnp.sum(g_steps, axis=0)                                     # [26, 26]
    cnt = jnp.float32(N * HW)
    mean = (w25 @ G[:_KK, _KK]) / cnt                                # [OC]
    ey2 = jnp.sum((w25 @ G[:_KK, :_KK]) * w25, axis=1) / cnt         # [OC]
    var = jnp.maximum(ey2 - mean * mean, 0.0)
    scale = gamma.astype(jnp.float32) * jax.lax.rsqrt(var + _EPS)
    shift = beta.astype(jnp.float32) - mean * scale
    w_aug = jnp.concatenate([w25 * scale[:, None], shift[:, None]], axis=1)  # [OC, 26]

    # ---- phase 2: fused conv + BN apply, single lane-dense output pass ------
    out_flat = pl.pallas_call(
        _make_apply_kernel(nb, H, W),
        out_shape=jax.ShapeDtypeStruct((N, OC, HW), jnp.float32),
        grid=(n_steps,),
        in_specs=[pl.BlockSpec((nb, _K, Hpv * W), lambda i: (i, 0, 0)),
                  pl.BlockSpec((OC, _KAUG), lambda i: (0, 0))],
        out_specs=pl.BlockSpec((nb, OC, HW), lambda i: (i, 0, 0)),
        scratch_shapes=[pltpu.VMEM((_KAUG, nb * HW), jnp.float32)],
        compiler_params=cparams,
    )(xs, w_aug)

    return out_flat.reshape(N, OC, H, W)


if __name__ == "__main__":
    key = jax.random.PRNGKey(0)
    k_x, k_w, k_b, k_g, k_be = jax.random.split(key, 5)

    # Shapes implied by the module: in_channels=1, out_channels=16, k=5, pad=2.
    N, H, W, OC = 2, 16, 16, 16
    x = jax.random.normal(k_x, (N, 1, H, W), dtype=jnp.float32)
    weight = 0.1 * jax.random.normal(k_w, (OC, 1, 5, 5), dtype=jnp.float32)
    bias = 0.1 * jax.random.normal(k_b, (OC,), dtype=jnp.float32)
    gamma = 1.0 + 0.1 * jax.random.normal(k_g, (OC,), dtype=jnp.float32)
    beta = 0.1 * jax.random.normal(k_be, (OC,), dtype=jnp.float32)

    out = conv_bn_forward(x, weight, bias, gamma, beta)
    out = jax.block_until_ready(out)
    assert out.shape == (N, OC, H, W)

    # Pure-JAX reference (explicit shifted-window conv + training-mode BN).
    xpad = jnp.pad(x[:, 0], ((0, 0), (2, 2), (2, 2)))
    ref_conv = jnp.zeros((N, OC, H, W), jnp.float32)
    for di in range(5):
        for dj in range(5):
            ref_conv = ref_conv + (weight[:, 0, di, dj][None, :, None, None]
                                   * xpad[:, None, di:di + H, dj:dj + W])
    ref_conv = ref_conv + bias[None, :, None, None]
    mu = ref_conv.mean(axis=(0, 2, 3), keepdims=True)
    va = ((ref_conv - mu) ** 2).mean(axis=(0, 2, 3), keepdims=True)
    ref = (gamma[None, :, None, None] * (ref_conv - mu)
           * jax.lax.rsqrt(va + 1e-5) + beta[None, :, None, None])

    err = float(jnp.max(jnp.abs(out - ref)))
    assert err < 1e-3, f"max abs error {err}"
    print("KERNEL_OK")
</pallas_src>

<mosaic_0001>
module attributes {stable_mosaic.version = 11 : i64} {
  func.func @kernel(%arg0: i32, %arg1: memref<1x5x320xf32, #tpu.memory_space<vmem>>, %arg2: memref<1x26x26xf32, #tpu.memory_space<vmem>>, %arg3: memref<26x256xf32, #tpu.memory_space<vmem>>) attributes {dimension_semantics = [#tpu.dimension_semantics<parallel>], iteration_bounds = array<i64: 2>, scalar_prefetch = 0 : i64, scratch_operands = 1 : i64, tpu.core_type = #tpu.core_type<tc>, window_params = [{transform_indices = @transform_0, window_bounds = array<i64: 1, 5, 320>}, {transform_indices = @transform_1, window_bounds = array<i64: 1, 26, 26>}]} {
    %c0 = arith.constant 0 : index
    %c0_0 = arith.constant 0 : index
    %c0_1 = arith.constant 0 : index
    %0 = vector.load %arg1[%c0, %c0_0, %c0_1] : memref<1x5x320xf32, #tpu.memory_space<vmem>>, vector<1x1x256xf32>
    %1 = vector.shape_cast %0 : vector<1x1x256xf32> to vector<1x256xf32>
    %c0_2 = arith.constant 0 : index
    %c0_3 = arith.constant 0 : index
    %2 = vector.load %arg3[%c0_2, %c0_3] : memref<26x256xf32, #tpu.memory_space<vmem>>, vector<1x256xf32>
    tpu.vector_store %arg3[%c0_2, %c0_3], %1 {strides = array<i32>} : memref<26x256xf32, #tpu.memory_space<vmem>>, vector<1x256xf32>,
    %c0_4 = arith.constant 0 : index
    %c1 = arith.constant 1 : index
    %c0_5 = arith.constant 0 : index
    %3 = vector.load %arg1[%c0_4, %c1, %c0_5] : memref<1x5x320xf32, #tpu.memory_space<vmem>>, vector<1x1x256xf32>
    %4 = vector.shape_cast %3 : vector<1x1x256xf32> to vector<1x256xf32>
    %c1_6 = arith.constant 1 : index
    %c0_7 = arith.constant 0 : index
    %5 = vector.load %arg3[%c1_6, %c0_7] : memref<26x256xf32, #tpu.memory_space<vmem>>, vector<1x256xf32>
    tpu.vector_store %arg3[%c1_6, %c0_7], %4 {strides = array<i32>} : memref<26x256xf32, #tpu.memory_space<vmem>>, vector<1x256xf32>,
    %c0_8 = arith.constant 0 : index
    %c2 = arith.constant 2 : index
    %c0_9 = arith.constant 0 : index
    %6 = vector.load %arg1[%c0_8, %c2, %c0_9] : memref<1x5x320xf32, #tpu.memory_space<vmem>>, vector<1x1x256xf32>
    %7 = vector.shape_cast %6 : vector<1x1x256xf32> to vector<1x256xf32>
    %c2_10 = arith.constant 2 : index
    %c0_11 = arith.constant 0 : index
    %8 = vector.load %arg3[%c2_10, %c0_11] : memref<26x256xf32, #tpu.memory_space<vmem>>, vector<1x256xf32>
    tpu.vector_store %arg3[%c2_10, %c0_11], %7 {strides = array<i32>} : memref<26x256xf32, #tpu.memory_space<vmem>>, vector<1x256xf32>,
    %c0_12 = arith.constant 0 : index
    %c3 = arith.constant 3 : index
    %c0_13 = arith.constant 0 : index
    %9 = vector.load %arg1[%c0_12, %c3, %c0_13] : memref<1x5x320xf32, #tpu.memory_space<vmem>>, vector<1x1x256xf32>
    %10 = vector.shape_cast %9 : vector<1x1x256xf32> to vector<1x256xf32>
    %c3_14 = arith.constant 3 : index
    %c0_15 = arith.constant 0 : index
    %11 = vector.load %arg3[%c3_14, %c0_15] : memref<26x256xf32, #tpu.memory_space<vmem>>, vector<1x256xf32>
    tpu.vector_store %arg3[%c3_14, %c0_15], %10 {strides = array<i32>} : memref<26x256xf32, #tpu.memory_space<vmem>>, vector<1x256xf32>,
    %c0_16 = arith.constant 0 : index
    %c4 = arith.constant 4 : index
    %c0_17 = arith.constant 0 : index
    %12 = vector.load %arg1[%c0_16, %c4, %c0_17] : memref<1x5x320xf32, #tpu.memory_space<vmem>>, vector<1x1x256xf32>
    %13 = vector.shape_cast %12 : vector<1x1x256xf32> to vector<1x256xf32>
    %c4_18 = arith.constant 4 : index
    %c0_19 = arith.constant 0 : index
    %14 = vector.load %arg3[%c4_18, %c0_19] : memref<26x256xf32, #tpu.memory_space<vmem>>, vector<1x256xf32>
    tpu.vector_store %arg3[%c4_18, %c0_19], %13 {strides = array<i32>} : memref<26x256xf32, #tpu.memory_space<vmem>>, vector<1x256xf32>,
    %c0_20 = arith.constant 0 : index
    %c0_21 = arith.constant 0 : index
    %c16 = arith.constant 16 : index
    %15 = vector.load %arg1[%c0_20, %c0_21, %c16] : memref<1x5x320xf32, #tpu.memory_space<vmem>>, vector<1x1x256xf32>
    %16 = vector.shape_cast %15 : vector<1x1x256xf32> to vector<1x256xf32>
    %c5 = arith.constant 5 : index
    %c0_22 = arith.constant 0 : index
    %17 = vector.load %arg3[%c5, %c0_22] : memref<26x256xf32, #tpu.memory_space<vmem>>, vector<1x256xf32>
    tpu.vector_store %arg3[%c5, %c0_22], %16 {strides = array<i32>} : memref<26x256xf32, #tpu.memory_space<vmem>>, vector<1x256xf32>,
    %c0_23 = arith.constant 0 : index
    %c1_24 = arith.constant 1 : index
    %c16_25 = arith.constant 16 : index
    %18 = vector.load %arg1[%c0_23, %c1_24, %c16_25] : memref<1x5x320xf32, #tpu.memory_space<vmem>>, vector<1x1x256xf32>
    %19 = vector.shape_cast %18 : vector<1x1x256xf32> to vector<1x256xf32>
    %c6 = arith.constant 6 : index
    %c0_26 = arith.constant 0 : index
    %20 = vector.load %arg3[%c6, %c0_26] : memref<26x256xf32, #tpu.memory_space<vmem>>, vector<1x256xf32>
    tpu.vector_store %arg3[%c6, %c0_26], %19 {strides = array<i32>} : memref<26x256xf32, #tpu.memory_space<vmem>>, vector<1x256xf32>,
    %c0_27 = arith.constant 0 : index
    %c2_28 = arith.constant 2 : index
    %c16_29 = arith.constant 16 : index
    %21 = vector.load %arg1[%c0_27, %c2_28, %c16_29] : memref<1x5x320xf32, #tpu.memory_space<vmem>>, vector<1x1x256xf32>
    %22 = vector.shape_cast %21 : vector<1x1x256xf32> to vector<1x256xf32>
    %c7 = arith.constant 7 : index
    %c0_30 = arith.constant 0 : index
    %23 = vector.load %arg3[%c7, %c0_30] : memref<26x256xf32, #tpu.memory_space<vmem>>, vector<1x256xf32>
    tpu.vector_store %arg3[%c7, %c0_30], %22 {strides = array<i32>} : memref<26x256xf32, #tpu.memory_space<vmem>>, vector<1x256xf32>,
    %c0_31 = arith.constant 0 : index
    %c3_32 = arith.constant 3 : index
    %c16_33 = arith.constant 16 : index
    %24 = vector.load %arg1[%c0_31, %c3_32, %c16_33] : memref<1x5x320xf32, #tpu.memory_space<vmem>>, vector<1x1x256xf32>
    %25 = vector.shape_cast %24 : vector<1x1x256xf32> to vector<1x256xf32>
    %c8 = arith.constant 8 : index
    %c0_34 = arith.constant 0 : index
    %26 = vector.load %arg3[%c8, %c0_34] : memref<26x256xf32, #tpu.memory_space<vmem>>, vector<1x256xf32>
    tpu.vector_store %arg3[%c8, %c0_34], %25 {strides = array<i32>} : memref<26x256xf32, #tpu.memory_space<vmem>>, vector<1x256xf32>,
    %c0_35 = arith.constant 0 : index
    %c4_36 = arith.constant 4 : index
    %c16_37 = arith.constant 16 : index
    %27 = vector.load %arg1[%c0_35, %c4_36, %c16_37] : memref<1x5x320xf32, #tpu.memory_space<vmem>>, vector<1x1x256xf32>
    %28 = vector.shape_cast %27 : vector<1x1x256xf32> to vector<1x256xf32>
    %c9 = arith.constant 9 : index
    %c0_38 = arith.constant 0 : index
    %29 = vector.load %arg3[%c9, %c0_38] : memref<26x256xf32, #tpu.memory_space<vmem>>, vector<1x256xf32>
    tpu.vector_store %arg3[%c9, %c0_38], %28 {strides = array<i32>} : memref<26x256xf32, #tpu.memory_space<vmem>>, vector<1x256xf32>,
    %c0_39 = arith.constant 0 : index
    %c0_40 = arith.constant 0 : index
    %c32 = arith.constant 32 : index
    %30 = vector.load %arg1[%c0_39, %c0_40, %c32] : memref<1x5x320xf32, #tpu.memory_space<vmem>>, vector<1x1x256xf32>
    %31 = vector.shape_cast %30 : vector<1x1x256xf32> to vector<1x256xf32>
    %c10 = arith.constant 10 : index
    %c0_41 = arith.constant 0 : index
    %32 = vector.load %arg3[%c10, %c0_41] : memref<26x256xf32, #tpu.memory_space<vmem>>, vector<1x256xf32>
    tpu.vector_store %arg3[%c10, %c0_41], %31 {strides = array<i32>} : memref<26x256xf32, #tpu.memory_space<vmem>>, vector<1x256xf32>,
    %c0_42 = arith.constant 0 : index
    %c1_43 = arith.constant 1 : index
    %c32_44 = arith.constant 32 : index
    %33 = vector.load %arg1[%c0_42, %c1_43, %c32_44] : memref<1x5x320xf32, #tpu.memory_space<vmem>>, vector<1x1x256xf32>
    %34 = vector.shape_cast %33 : vector<1x1x256xf32> to vector<1x256xf32>
    %c11 = arith.constant 11 : index
    %c0_45 = arith.constant 0 : index
    %35 = vector.load %arg3[%c11, %c0_45] : memref<26x256xf32, #tpu.memory_space<vmem>>, vector<1x256xf32>
    tpu.vector_store %arg3[%c11, %c0_45], %34 {strides = array<i32>} : memref<26x256xf32, #tpu.memory_space<vmem>>, vector<1x256xf32>,
    %c0_46 = arith.constant 0 : index
    %c2_47 = arith.constant 2 : index
    %c32_48 = arith.constant 32 : index
    %36 = vector.load %arg1[%c0_46, %c2_47, %c32_48] : memref<1x5x320xf32, #tpu.memory_space<vmem>>, vector<1x1x256xf32>
    %37 = vector.shape_cast %36 : vector<1x1x256xf32> to vector<1x256xf32>
    %c12 = arith.constant 12 : index
    %c0_49 = arith.constant 0 : index
    %38 = vector.load %arg3[%c12, %c0_49] : memref<26x256xf32, #tpu.memory_space<vmem>>, vector<1x256xf32>
    tpu.vector_store %arg3[%c12, %c0_49], %37 {strides = array<i32>} : memref<26x256xf32, #tpu.memory_space<vmem>>, vector<1x256xf32>,
    %c0_50 = arith.constant 0 : index
    %c3_51 = arith.constant 3 : index
    %c32_52 = arith.constant 32 : index
    %39 = vector.load %arg1[%c0_50, %c3_51, %c32_52] : memref<1x5x320xf32, #tpu.memory_space<vmem>>, vector<1x1x256xf32>
    %40 = vector.shape_cast %39 : vector<1x1x256xf32> to vector<1x256xf32>
    %c13 = arith.constant 13 : index
    %c0_53 = arith.constant 0 : index
    %41 = vector.load %arg3[%c13, %c0_53] : memref<26x256xf32, #tpu.memory_space<vmem>>, vector<1x256xf32>
    tpu.vector_store %arg3[%c13, %c0_53], %40 {strides = array<i32>} : memref<26x256xf32, #tpu.memory_space<vmem>>, vector<1x256xf32>,
    %c0_54 = arith.constant 0 : index
    %c4_55 = arith.constant 4 : index
    %c32_56 = arith.constant 32 : index
    %42 = vector.load %arg1[%c0_54, %c4_55, %c32_56] : memref<1x5x320xf32, #tpu.memory_space<vmem>>, vector<1x1x256xf32>
    %43 = vector.shape_cast %42 : vector<1x1x256xf32> to vector<1x256xf32>
    %c14 = arith.constant 14 : index
    %c0_57 = arith.constant 0 : index
    %44 = vector.load %arg3[%c14, %c0_57] : memref<26x256xf32, #tpu.memory_space<vmem>>, vector<1x256xf32>
    tpu.vector_store %arg3[%c14, %c0_57], %43 {strides = array<i32>} : memref<26x256xf32, #tpu.memory_space<vmem>>, vector<1x256xf32>,
    %c0_58 = arith.constant 0 : index
    %c0_59 = arith.constant 0 : index
    %c48 = arith.constant 48 : index
    %45 = vector.load %arg1[%c0_58, %c0_59, %c48] : memref<1x5x320xf32, #tpu.memory_space<vmem>>, vector<1x1x256xf32>
    %46 = vector.shape_cast %45 : vector<1x1x256xf32> to vector<1x256xf32>
    %c15 = arith.constant 15 : index
    %c0_60 = arith.constant 0 : index
    %47 = vector.load %arg3[%c15, %c0_60] : memref<26x256xf32, #tpu.memory_space<vmem>>, vector<1x256xf32>
    tpu.vector_store %arg3[%c15, %c0_60], %46 {strides = array<i32>} : memref<26x256xf32, #tpu.memory_space<vmem>>, vector<1x256xf32>,
    %c0_61 = arith.constant 0 : index
    %c1_62 = arith.constant 1 : index
    %c48_63 = arith.constant 48 : index
    %48 = vector.load %arg1[%c0_61, %c1_62, %c48_63] : memref<1x5x320xf32, #tpu.memory_space<vmem>>, vector<1x1x256xf32>
    %49 = vector.shape_cast %48 : vector<1x1x256xf32> to vector<1x256xf32>
    %c16_64 = arith.constant 16 : index
    %c0_65 = arith.constant 0 : index
    %50 = vector.load %arg3[%c16_64, %c0_65] : memref<26x256xf32, #tpu.memory_space<vmem>>, vector<1x256xf32>
    tpu.vector_store %arg3[%c16_64, %c0_65], %49 {strides = array<i32>} : memref<26x256xf32, #tpu.memory_space<vmem>>, vector<1x256xf32>,
    %c0_66 = arith.constant 0 : index
    %c2_67 = arith.constant 2 : index
    %c48_68 = arith.constant 48 : index
    %51 = vector.load %arg1[%c0_66, %c2_67, %c48_68] : memref<1x5x320xf32, #tpu.memory_space<vmem>>, vector<1x1x256xf32>
    %52 = vector.shape_cast %51 : vector<1x1x256xf32> to vector<1x256xf32>
    %c17 = arith.constant 17 : index
    %c0_69 = arith.constant 0 : index
    %53 = vector.load %arg3[%c17, %c0_69] : memref<26x256xf32, #tpu.memory_space<vmem>>, vector<1x256xf32>
    tpu.vector_store %arg3[%c17, %c0_69], %52 {strides = array<i32>} : memref<26x256xf32, #tpu.memory_space<vmem>>, vector<1x256xf32>,
    %c0_70 = arith.constant 0 : index
    %c3_71 = arith.constant 3 : index
    %c48_72 = arith.constant 48 : index
    %54 = vector.load %arg1[%c0_70, %c3_71, %c48_72] : memref<1x5x320xf32, #tpu.memory_space<vmem>>, vector<1x1x256xf32>
    %55 = vector.shape_cast %54 : vector<1x1x256xf32> to vector<1x256xf32>
    %c18 = arith.constant 18 : index
    %c0_73 = arith.constant 0 : index
    %56 = vector.load %arg3[%c18, %c0_73] : memref<26x256xf32, #tpu.memory_space<vmem>>, vector<1x256xf32>
    tpu.vector_store %arg3[%c18, %c0_73], %55 {strides = array<i32>} : memref<26x256xf32, #tpu.memory_space<vmem>>, vector<1x256xf32>,
    %c0_74 = arith.constant 0 : index
    %c4_75 = arith.constant 4 : index
    %c48_76 = arith.constant 48 : index
    %57 = vector.load %arg1[%c0_74, %c4_75, %c48_76] : memref<1x5x320xf32, #tpu.memory_space<vmem>>, vector<1x1x256xf32>
    %58 = vector.shape_cast %57 : vector<1x1x256xf32> to vector<1x256xf32>
    %c19 = arith.constant 19 : index
    %c0_77 = arith.constant 0 : index
    %59 = vector.load %arg3[%c19, %c0_77] : memref<26x256xf32, #tpu.memory_space<vmem>>, vector<1x256xf32>
    tpu.vector_store %arg3[%c19, %c0_77], %58 {strides = array<i32>} : memref<26x256xf32, #tpu.memory_space<vmem>>, vector<1x256xf32>,
    %c0_78 = arith.constant 0 : index
    %c0_79 = arith.constant 0 : index
    %c64 = arith.constant 64 : index
    %60 = vector.load %arg1[%c0_78, %c0_79, %c64] : memref<1x5x320xf32, #tpu.memory_space<vmem>>, vector<1x1x256xf32>
    %61 = vector.shape_cast %60 : vector<1x1x256xf32> to vector<1x256xf32>
    %c20 = arith.constant 20 : index
    %c0_80 = arith.constant 0 : index
    %62 = vector.load %arg3[%c20, %c0_80] : memref<26x256xf32, #tpu.memory_space<vmem>>, vector<1x256xf32>
    tpu.vector_store %arg3[%c20, %c0_80], %61 {strides = array<i32>} : memref<26x256xf32, #tpu.memory_space<vmem>>, vector<1x256xf32>,
    %c0_81 = arith.constant 0 : index
    %c1_82 = arith.constant 1 : index
    %c64_83 = arith.constant 64 : index
    %63 = vector.load %arg1[%c0_81, %c1_82, %c64_83] : memref<1x5x320xf32, #tpu.memory_space<vmem>>, vector<1x1x256xf32>
    %64 = vector.shape_cast %63 : vector<1x1x256xf32> to vector<1x256xf32>
    %c21 = arith.constant 21 : index
    %c0_84 = arith.constant 0 : index
    %65 = vector.load %arg3[%c21, %c0_84] : memref<26x256xf32, #tpu.memory_space<vmem>>, vector<1x256xf32>
    tpu.vector_store %arg3[%c21, %c0_84], %64 {strides = array<i32>} : memref<26x256xf32, #tpu.memory_space<vmem>>, vector<1x256xf32>,
    %c0_85 = arith.constant 0 : index
    %c2_86 = arith.constant 2 : index
    %c64_87 = arith.constant 64 : index
    %66 = vector.load %arg1[%c0_85, %c2_86, %c64_87] : memref<1x5x320xf32, #tpu.memory_space<vmem>>, vector<1x1x256xf32>
    %67 = vector.shape_cast %66 : vector<1x1x256xf32> to vector<1x256xf32>
    %c22 = arith.constant 22 : index
    %c0_88 = arith.constant 0 : index
    %68 = vector.load %arg3[%c22, %c0_88] : memref<26x256xf32, #tpu.memory_space<vmem>>, vector<1x256xf32>
    tpu.vector_store %arg3[%c22, %c0_88], %67 {strides = array<i32>} : memref<26x256xf32, #tpu.memory_space<vmem>>, vector<1x256xf32>,
    %c0_89 = arith.constant 0 : index
    %c3_90 = arith.constant 3 : index
    %c64_91 = arith.constant 64 : index
    %69 = vector.load %arg1[%c0_89, %c3_90, %c64_91] : memref<1x5x320xf32, #tpu.memory_space<vmem>>, vector<1x1x256xf32>
    %70 = vector.shape_cast %69 : vector<1x1x256xf32> to vector<1x256xf32>
    %c23 = arith.constant 23 : index
    %c0_92 = arith.constant 0 : index
    %71 = vector.load %arg3[%c23, %c0_92] : memref<26x256xf32, #tpu.memory_space<vmem>>, vector<1x256xf32>
    tpu.vector_store %arg3[%c23, %c0_92], %70 {strides = array<i32>} : memref<26x256xf32, #tpu.memory_space<vmem>>, vector<1x256xf32>,
    %c0_93 = arith.constant 0 : index
    %c4_94 = arith.constant 4 : index
    %c64_95 = arith.constant 64 : index
    %72 = vector.load %arg1[%c0_93, %c4_94, %c64_95] : memref<1x5x320xf32, #tpu.memory_space<vmem>>, vector<1x1x256xf32>
    %73 = vector.shape_cast %72 : vector<1x1x256xf32> to vector<1x256xf32>
    %c24 = arith.constant 24 : index
    %c0_96 = arith.constant 0 : index
    %74 = vector.load %arg3[%c24, %c0_96] : memref<26x256xf32, #tpu.memory_space<vmem>>, vector<1x256xf32>
    tpu.vector_store %arg3[%c24, %c0_96], %73 {strides = array<i32>} : memref<26x256xf32, #tpu.memory_space<vmem>>, vector<1x256xf32>,
    %cst = arith.constant 1.000000e+00 : f32
    %75 = vector.broadcast %cst : f32 to vector<1x256xf32>
    %c25 = arith.constant 25 : index
    %c0_97 = arith.constant 0 : index
    %76 = vector.load %arg3[%c25, %c0_97] : memref<26x256xf32, #tpu.memory_space<vmem>>, vector<1x256xf32>
    tpu.vector_store %arg3[%c25, %c0_97], %75 {strides = array<i32>} : memref<26x256xf32, #tpu.memory_space<vmem>>, vector<1x256xf32>,
    %c0_98 = arith.constant 0 : index
    %c0_99 = arith.constant 0 : index
    %77 = vector.load %arg3[%c0_98, %c0_99] : memref<26x256xf32, #tpu.memory_space<vmem>>, vector<26x256xf32>
    %cst_100 = arith.constant dense<0.000000e+00> : vector<26x26xf32>
    %78 = tpu.matmul %77, %77, %cst_100 {dimension_numbers = #tpu.dot_dimension_numbers<[1], [1], [0], [0], [0, 0, 1, 0], [], []>} : vector<26x256xf32>, vector<26x256xf32>, vector<26x26xf32> -> vector<26x26xf32>
    %c0_101 = arith.constant 0 : index
    %c0_102 = arith.constant 0 : index
    %c0_103 = arith.constant 0 : index
    %79 = vector.load %arg2[%c0_101, %c0_102, %c0_103] : memref<1x26x26xf32, #tpu.memory_space<vmem>>, vector<1x26x26xf32>
    %80 = vector.shape_cast %79 : vector<1x26x26xf32> to vector<26x26xf32>
    %81 = vector.shape_cast %78 : vector<26x26xf32> to vector<1x26x26xf32>
    tpu.vector_store %arg2[%c0_101, %c0_102, %c0_103], %81 {strides = array<i32>} : memref<1x26x26xf32, #tpu.memory_space<vmem>>, vector<1x26x26xf32>,
    return
  }
  func.func @transform_0(%arg0: i32) -> (i32, i32, i32) {
    %c0_i32 = arith.constant 0 : i32
    %c0_i32_0 = arith.constant 0 : i32
    %c0_i32_1 = arith.constant 0 : i32
    return %arg0, %c0_i32, %c0_i32_0 : i32, i32, i32
  }
  func.func @transform_1(%arg0: i32) -> (i32, i32, i32) {
    %c0_i32 = arith.constant 0 : i32
    %c0_i32_0 = arith.constant 0 : i32
    %c0_i32_1 = arith.constant 0 : i32
    return %arg0, %c0_i32, %c0_i32_0 : i32, i32, i32
  }
}

module attributes {stable_mosaic.version = 11 : i64} {
  func.func @kernel(%arg0: i32, %arg1: memref<1x5x320xf32, #tpu.memory_space<vmem>>, %arg2: memref<16x26xf32, #tpu.memory_space<vmem>>, %arg3: memref<1x16x256xf32, #tpu.memory_space<vmem>>, %arg4: memref<26x256xf32, #tpu.memory_space<vmem>>) attributes {dimension_semantics = [#tpu.dimension_semantics<parallel>], iteration_bounds = array<i64: 2>, scalar_prefetch = 0 : i64, scratch_operands = 1 : i64, tpu.core_type = #tpu.core_type<tc>, window_params = [{transform_indices = @transform_0, window_bounds = array<i64: 1, 5, 320>}, {pipeline_mode = #tpu.pipeline_mode<synchronous>, transform_indices = @transform_1, window_bounds = array<i64: 16, 26>}, {transform_indices = @transform_2, window_bounds = array<i64: 1, 16, 256>}]} {
    %c0 = arith.constant 0 : index
    %c0_0 = arith.constant 0 : index
    %c0_1 = arith.constant 0 : index
    %0 = vector.load %arg1[%c0, %c0_0, %c0_1] : memref<1x5x320xf32, #tpu.memory_space<vmem>>, vector<1x1x256xf32>
    %1 = vector.shape_cast %0 : vector<1x1x256xf32> to vector<1x256xf32>
    %c0_2 = arith.constant 0 : index
    %c0_3 = arith.constant 0 : index
    %2 = vector.load %arg4[%c0_2, %c0_3] : memref<26x256xf32, #tpu.memory_space<vmem>>, vector<1x256xf32>
    tpu.vector_store %arg4[%c0_2, %c0_3], %1 {strides = array<i32>} : memref<26x256xf32, #tpu.memory_space<vmem>>, vector<1x256xf32>,
    %c0_4 = arith.constant 0 : index
    %c1 = arith.constant 1 : index
    %c0_5 = arith.constant 0 : index
    %3 = vector.load %arg1[%c0_4, %c1, %c0_5] : memref<1x5x320xf32, #tpu.memory_space<vmem>>, vector<1x1x256xf32>
    %4 = vector.shape_cast %3 : vector<1x1x256xf32> to vector<1x256xf32>
    %c1_6 = arith.constant 1 : index
    %c0_7 = arith.constant 0 : index
    %5 = vector.load %arg4[%c1_6, %c0_7] : memref<26x256xf32, #tpu.memory_space<vmem>>, vector<1x256xf32>
    tpu.vector_store %arg4[%c1_6, %c0_7], %4 {strides = array<i32>} : memref<26x256xf32, #tpu.memory_space<vmem>>, vector<1x256xf32>,
    %c0_8 = arith.constant 0 : index
    %c2 = arith.constant 2 : index
    %c0_9 = arith.constant 0 : index
    %6 = vector.load %arg1[%c0_8, %c2, %c0_9] : memref<1x5x320xf32, #tpu.memory_space<vmem>>, vector<1x1x256xf32>
    %7 = vector.shape_cast %6 : vector<1x1x256xf32> to vector<1x256xf32>
    %c2_10 = arith.constant 2 : index
    %c0_11 = arith.constant 0 : index
    %8 = vector.load %arg4[%c2_10, %c0_11] : memref<26x256xf32, #tpu.memory_space<vmem>>, vector<1x256xf32>
    tpu.vector_store %arg4[%c2_10, %c0_11], %7 {strides = array<i32>} : memref<26x256xf32, #tpu.memory_space<vmem>>, vector<1x256xf32>,
    %c0_12 = arith.constant 0 : index
    %c3 = arith.constant 3 : index
    %c0_13 = arith.constant 0 : index
    %9 = vector.load %arg1[%c0_12, %c3, %c0_13] : memref<1x5x320xf32, #tpu.memory_space<vmem>>, vector<1x1x256xf32>
    %10 = vector.shape_cast %9 : vector<1x1x256xf32> to vector<1x256xf32>
    %c3_14 = arith.constant 3 : index
    %c0_15 = arith.constant 0 : index
    %11 = vector.load %arg4[%c3_14, %c0_15] : memref<26x256xf32, #tpu.memory_space<vmem>>, vector<1x256xf32>
    tpu.vector_store %arg4[%c3_14, %c0_15], %10 {strides = array<i32>} : memref<26x256xf32, #tpu.memory_space<vmem>>, vector<1x256xf32>,
    %c0_16 = arith.constant 0 : index
    %c4 = arith.constant 4 : index
    %c0_17 = arith.constant 0 : index
    %12 = vector.load %arg1[%c0_16, %c4, %c0_17] : memref<1x5x320xf32, #tpu.memory_space<vmem>>, vector<1x1x256xf32>
    %13 = vector.shape_cast %12 : vector<1x1x256xf32> to vector<1x256xf32>
    %c4_18 = arith.constant 4 : index
    %c0_19 = arith.constant 0 : index
    %14 = vector.load %arg4[%c4_18, %c0_19] : memref<26x256xf32, #tpu.memory_space<vmem>>, vector<1x256xf32>
    tpu.vector_store %arg4[%c4_18, %c0_19], %13 {strides = array<i32>} : memref<26x256xf32, #tpu.memory_space<vmem>>, vector<1x256xf32>,
    %c0_20 = arith.constant 0 : index
    %c0_21 = arith.constant 0 : index
    %c16 = arith.constant 16 : index
    %15 = vector.load %arg1[%c0_20, %c0_21, %c16] : memref<1x5x320xf32, #tpu.memory_space<vmem>>, vector<1x1x256xf32>
    %16 = vector.shape_cast %15 : vector<1x1x256xf32> to vector<1x256xf32>
    %c5 = arith.constant 5 : index
    %c0_22 = arith.constant 0 : index
    %17 = vector.load %arg4[%c5, %c0_22] : memref<26x256xf32, #tpu.memory_space<vmem>>, vector<1x256xf32>
    tpu.vector_store %arg4[%c5, %c0_22], %16 {strides = array<i32>} : memref<26x256xf32, #tpu.memory_space<vmem>>, vector<1x256xf32>,
    %c0_23 = arith.constant 0 : index
    %c1_24 = arith.constant 1 : index
    %c16_25 = arith.constant 16 : index
    %18 = vector.load %arg1[%c0_23, %c1_24, %c16_25] : memref<1x5x320xf32, #tpu.memory_space<vmem>>, vector<1x1x256xf32>
    %19 = vector.shape_cast %18 : vector<1x1x256xf32> to vector<1x256xf32>
    %c6 = arith.constant 6 : index
    %c0_26 = arith.constant 0 : index
    %20 = vector.load %arg4[%c6, %c0_26] : memref<26x256xf32, #tpu.memory_space<vmem>>, vector<1x256xf32>
    tpu.vector_store %arg4[%c6, %c0_26], %19 {strides = array<i32>} : memref<26x256xf32, #tpu.memory_space<vmem>>, vector<1x256xf32>,
    %c0_27 = arith.constant 0 : index
    %c2_28 = arith.constant 2 : index
    %c16_29 = arith.constant 16 : index
    %21 = vector.load %arg1[%c0_27, %c2_28, %c16_29] : memref<1x5x320xf32, #tpu.memory_space<vmem>>, vector<1x1x256xf32>
    %22 = vector.shape_cast %21 : vector<1x1x256xf32> to vector<1x256xf32>
    %c7 = arith.constant 7 : index
    %c0_30 = arith.constant 0 : index
    %23 = vector.load %arg4[%c7, %c0_30] : memref<26x256xf32, #tpu.memory_space<vmem>>, vector<1x256xf32>
    tpu.vector_store %arg4[%c7, %c0_30], %22 {strides = array<i32>} : memref<26x256xf32, #tpu.memory_space<vmem>>, vector<1x256xf32>,
    %c0_31 = arith.constant 0 : index
    %c3_32 = arith.constant 3 : index
    %c16_33 = arith.constant 16 : index
    %24 = vector.load %arg1[%c0_31, %c3_32, %c16_33] : memref<1x5x320xf32, #tpu.memory_space<vmem>>, vector<1x1x256xf32>
    %25 = vector.shape_cast %24 : vector<1x1x256xf32> to vector<1x256xf32>
    %c8 = arith.constant 8 : index
    %c0_34 = arith.constant 0 : index
    %26 = vector.load %arg4[%c8, %c0_34] : memref<26x256xf32, #tpu.memory_space<vmem>>, vector<1x256xf32>
    tpu.vector_store %arg4[%c8, %c0_34], %25 {strides = array<i32>} : memref<26x256xf32, #tpu.memory_space<vmem>>, vector<1x256xf32>,
    %c0_35 = arith.constant 0 : index
    %c4_36 = arith.constant 4 : index
    %c16_37 = arith.constant 16 : index
    %27 = vector.load %arg1[%c0_35, %c4_36, %c16_37] : memref<1x5x320xf32, #tpu.memory_space<vmem>>, vector<1x1x256xf32>
    %28 = vector.shape_cast %27 : vector<1x1x256xf32> to vector<1x256xf32>
    %c9 = arith.constant 9 : index
    %c0_38 = arith.constant 0 : index
    %29 = vector.load %arg4[%c9, %c0_38] : memref<26x256xf32, #tpu.memory_space<vmem>>, vector<1x256xf32>
    tpu.vector_store %arg4[%c9, %c0_38], %28 {strides = array<i32>} : memref<26x256xf32, #tpu.memory_space<vmem>>, vector<1x256xf32>,
    %c0_39 = arith.constant 0 : index
    %c0_40 = arith.constant 0 : index
    %c32 = arith.constant 32 : index
    %30 = vector.load %arg1[%c0_39, %c0_40, %c32] : memref<1x5x320xf32, #tpu.memory_space<vmem>>, vector<1x1x256xf32>
    %31 = vector.shape_cast %30 : vector<1x1x256xf32> to vector<1x256xf32>
    %c10 = arith.constant 10 : index
    %c0_41 = arith.constant 0 : index
    %32 = vector.load %arg4[%c10, %c0_41] : memref<26x256xf32, #tpu.memory_space<vmem>>, vector<1x256xf32>
    tpu.vector_store %arg4[%c10, %c0_41], %31 {strides = array<i32>} : memref<26x256xf32, #tpu.memory_space<vmem>>, vector<1x256xf32>,
    %c0_42 = arith.constant 0 : index
    %c1_43 = arith.constant 1 : index
    %c32_44 = arith.constant 32 : index
    %33 = vector.load %arg1[%c0_42, %c1_43, %c32_44] : memref<1x5x320xf32, #tpu.memory_space<vmem>>, vector<1x1x256xf32>
    %34 = vector.shape_cast %33 : vector<1x1x256xf32> to vector<1x256xf32>
    %c11 = arith.constant 11 : index
    %c0_45 = arith.constant 0 : index
    %35 = vector.load %arg4[%c11, %c0_45] : memref<26x256xf32, #tpu.memory_space<vmem>>, vector<1x256xf32>
    tpu.vector_store %arg4[%c11, %c0_45], %34 {strides = array<i32>} : memref<26x256xf32, #tpu.memory_space<vmem>>, vector<1x256xf32>,
    %c0_46 = arith.constant 0 : index
    %c2_47 = arith.constant 2 : index
    %c32_48 = arith.constant 32 : index
    %36 = vector.load %arg1[%c0_46, %c2_47, %c32_48] : memref<1x5x320xf32, #tpu.memory_space<vmem>>, vector<1x1x256xf32>
    %37 = vector.shape_cast %36 : vector<1x1x256xf32> to vector<1x256xf32>
    %c12 = arith.constant 12 : index
    %c0_49 = arith.constant 0 : index
    %38 = vector.load %arg4[%c12, %c0_49] : memref<26x256xf32, #tpu.memory_space<vmem>>, vector<1x256xf32>
    tpu.vector_store %arg4[%c12, %c0_49], %37 {strides = array<i32>} : memref<26x256xf32, #tpu.memory_space<vmem>>, vector<1x256xf32>,
    %c0_50 = arith.constant 0 : index
    %c3_51 = arith.constant 3 : index
    %c32_52 = arith.constant 32 : index
    %39 = vector.load %arg1[%c0_50, %c3_51, %c32_52] : memref<1x5x320xf32, #tpu.memory_space<vmem>>, vector<1x1x256xf32>
    %40 = vector.shape_cast %39 : vector<1x1x256xf32> to vector<1x256xf32>
    %c13 = arith.constant 13 : index
    %c0_53 = arith.constant 0 : index
    %41 = vector.load %arg4[%c13, %c0_53] : memref<26x256xf32, #tpu.memory_space<vmem>>, vector<1x256xf32>
    tpu.vector_store %arg4[%c13, %c0_53], %40 {strides = array<i32>} : memref<26x256xf32, #tpu.memory_space<vmem>>, vector<1x256xf32>,
    %c0_54 = arith.constant 0 : index
    %c4_55 = arith.constant 4 : index
    %c32_56 = arith.constant 32 : index
    %42 = vector.load %arg1[%c0_54, %c4_55, %c32_56] : memref<1x5x320xf32, #tpu.memory_space<vmem>>, vector<1x1x256xf32>
    %43 = vector.shape_cast %42 : vector<1x1x256xf32> to vector<1x256xf32>
    %c14 = arith.constant 14 : index
    %c0_57 = arith.constant 0 : index
    %44 = vector.load %arg4[%c14, %c0_57] : memref<26x256xf32, #tpu.memory_space<vmem>>, vector<1x256xf32>
    tpu.vector_store %arg4[%c14, %c0_57], %43 {strides = array<i32>} : memref<26x256xf32, #tpu.memory_space<vmem>>, vector<1x256xf32>,
    %c0_58 = arith.constant 0 : index
    %c0_59 = arith.constant 0 : index
    %c48 = arith.constant 48 : index
    %45 = vector.load %arg1[%c0_58, %c0_59, %c48] : memref<1x5x320xf32, #tpu.memory_space<vmem>>, vector<1x1x256xf32>
    %46 = vector.shape_cast %45 : vector<1x1x256xf32> to vector<1x256xf32>
    %c15 = arith.constant 15 : index
    %c0_60 = arith.constant 0 : index
    %47 = vector.load %arg4[%c15, %c0_60] : memref<26x256xf32, #tpu.memory_space<vmem>>, vector<1x256xf32>
    tpu.vector_store %arg4[%c15, %c0_60], %46 {strides = array<i32>} : memref<26x256xf32, #tpu.memory_space<vmem>>, vector<1x256xf32>,
    %c0_61 = arith.constant 0 : index
    %c1_62 = arith.constant 1 : index
    %c48_63 = arith.constant 48 : index
    %48 = vector.load %arg1[%c0_61, %c1_62, %c48_63] : memref<1x5x320xf32, #tpu.memory_space<vmem>>, vector<1x1x256xf32>
    %49 = vector.shape_cast %48 : vector<1x1x256xf32> to vector<1x256xf32>
    %c16_64 = arith.constant 16 : index
    %c0_65 = arith.constant 0 : index
    %50 = vector.load %arg4[%c16_64, %c0_65] : memref<26x256xf32, #tpu.memory_space<vmem>>, vector<1x256xf32>
    tpu.vector_store %arg4[%c16_64, %c0_65], %49 {strides = array<i32>} : memref<26x256xf32, #tpu.memory_space<vmem>>, vector<1x256xf32>,
    %c0_66 = arith.constant 0 : index
    %c2_67 = arith.constant 2 : index
    %c48_68 = arith.constant 48 : index
    %51 = vector.load %arg1[%c0_66, %c2_67, %c48_68] : memref<1x5x320xf32, #tpu.memory_space<vmem>>, vector<1x1x256xf32>
    %52 = vector.shape_cast %51 : vector<1x1x256xf32> to vector<1x256xf32>
    %c17 = arith.constant 17 : index
    %c0_69 = arith.constant 0 : index
    %53 = vector.load %arg4[%c17, %c0_69] : memref<26x256xf32, #tpu.memory_space<vmem>>, vector<1x256xf32>
    tpu.vector_store %arg4[%c17, %c0_69], %52 {strides = array<i32>} : memref<26x256xf32, #tpu.memory_space<vmem>>, vector<1x256xf32>,
    %c0_70 = arith.constant 0 : index
    %c3_71 = arith.constant 3 : index
    %c48_72 = arith.constant 48 : index
    %54 = vector.load %arg1[%c0_70, %c3_71, %c48_72] : memref<1x5x320xf32, #tpu.memory_space<vmem>>, vector<1x1x256xf32>
    %55 = vector.shape_cast %54 : vector<1x1x256xf32> to vector<1x256xf32>
    %c18 = arith.constant 18 : index
    %c0_73 = arith.constant 0 : index
    %56 = vector.load %arg4[%c18, %c0_73] : memref<26x256xf32, #tpu.memory_space<vmem>>, vector<1x256xf32>
    tpu.vector_store %arg4[%c18, %c0_73], %55 {strides = array<i32>} : memref<26x256xf32, #tpu.memory_space<vmem>>, vector<1x256xf32>,
    %c0_74 = arith.constant 0 : index
    %c4_75 = arith.constant 4 : index
    %c48_76 = arith.constant 48 : index
    %57 = vector.load %arg1[%c0_74, %c4_75, %c48_76] : memref<1x5x320xf32, #tpu.memory_space<vmem>>, vector<1x1x256xf32>
    %58 = vector.shape_cast %57 : vector<1x1x256xf32> to vector<1x256xf32>
    %c19 = arith.constant 19 : index
    %c0_77 = arith.constant 0 : index
    %59 = vector.load %arg4[%c19, %c0_77] : memref<26x256xf32, #tpu.memory_space<vmem>>, vector<1x256xf32>
    tpu.vector_store %arg4[%c19, %c0_77], %58 {strides = array<i32>} : memref<26x256xf32, #tpu.memory_space<vmem>>, vector<1x256xf32>,
    %c0_78 = arith.constant 0 : index
    %c0_79 = arith.constant 0 : index
    %c64 = arith.constant 64 : index
    %60 = vector.load %arg1[%c0_78, %c0_79, %c64] : memref<1x5x320xf32, #tpu.memory_space<vmem>>, vector<1x1x256xf32>
    %61 = vector.shape_cast %60 : vector<1x1x256xf32> to vector<1x256xf32>
    %c20 = arith.constant 20 : index
    %c0_80 = arith.constant 0 : index
    %62 = vector.load %arg4[%c20, %c0_80] : memref<26x256xf32, #tpu.memory_space<vmem>>, vector<1x256xf32>
    tpu.vector_store %arg4[%c20, %c0_80], %61 {strides = array<i32>} : memref<26x256xf32, #tpu.memory_space<vmem>>, vector<1x256xf32>,
    %c0_81 = arith.constant 0 : index
    %c1_82 = arith.constant 1 : index
    %c64_83 = arith.constant 64 : index
    %63 = vector.load %arg1[%c0_81, %c1_82, %c64_83] : memref<1x5x320xf32, #tpu.memory_space<vmem>>, vector<1x1x256xf32>
    %64 = vector.shape_cast %63 : vector<1x1x256xf32> to vector<1x256xf32>
    %c21 = arith.constant 21 : index
    %c0_84 = arith.constant 0 : index
    %65 = vector.load %arg4[%c21, %c0_84] : memref<26x256xf32, #tpu.memory_space<vmem>>, vector<1x256xf32>
    tpu.vector_store %arg4[%c21, %c0_84], %64 {strides = array<i32>} : memref<26x256xf32, #tpu.memory_space<vmem>>, vector<1x256xf32>,
    %c0_85 = arith.constant 0 : index
    %c2_86 = arith.constant 2 : index
    %c64_87 = arith.constant 64 : index
    %66 = vector.load %arg1[%c0_85, %c2_86, %c64_87] : memref<1x5x320xf32, #tpu.memory_space<vmem>>, vector<1x1x256xf32>
    %67 = vector.shape_cast %66 : vector<1x1x256xf32> to vector<1x256xf32>
    %c22 = arith.constant 22 : index
    %c0_88 = arith.constant 0 : index
    %68 = vector.load %arg4[%c22, %c0_88] : memref<26x256xf32, #tpu.memory_space<vmem>>, vector<1x256xf32>
    tpu.vector_store %arg4[%c22, %c0_88], %67 {strides = array<i32>} : memref<26x256xf32, #tpu.memory_space<vmem>>, vector<1x256xf32>,
    %c0_89 = arith.constant 0 : index
    %c3_90 = arith.constant 3 : index
    %c64_91 = arith.constant 64 : index
    %69 = vector.load %arg1[%c0_89, %c3_90, %c64_91] : memref<1x5x320xf32, #tpu.memory_space<vmem>>, vector<1x1x256xf32>
    %70 = vector.shape_cast %69 : vector<1x1x256xf32> to vector<1x256xf32>
    %c23 = arith.constant 23 : index
    %c0_92 = arith.constant 0 : index
    %71 = vector.load %arg4[%c23, %c0_92] : memref<26x256xf32, #tpu.memory_space<vmem>>, vector<1x256xf32>
    tpu.vector_store %arg4[%c23, %c0_92], %70 {strides = array<i32>} : memref<26x256xf32, #tpu.memory_space<vmem>>, vector<1x256xf32>,
    %c0_93 = arith.constant 0 : index
    %c4_94 = arith.constant 4 : index
    %c64_95 = arith.constant 64 : index
    %72 = vector.load %arg1[%c0_93, %c4_94, %c64_95] : memref<1x5x320xf32, #tpu.memory_space<vmem>>, vector<1x1x256xf32>
    %73 = vector.shape_cast %72 : vector<1x1x256xf32> to vector<1x256xf32>
    %c24 = arith.constant 24 : index
    %c0_96 = arith.constant 0 : index
    %74 = vector.load %arg4[%c24, %c0_96] : memref<26x256xf32, #tpu.memory_space<vmem>>, vector<1x256xf32>
    tpu.vector_store %arg4[%c24, %c0_96], %73 {strides = array<i32>} : memref<26x256xf32, #tpu.memory_space<vmem>>, vector<1x256xf32>,
    %cst = arith.constant 1.000000e+00 : f32
    %75 = vector.broadcast %cst : f32 to vector<1x256xf32>
    %c25 = arith.constant 25 : index
    %c0_97 = arith.constant 0 : index
    %76 = vector.load %arg4[%c25, %c0_97] : memref<26x256xf32, #tpu.memory_space<vmem>>, vector<1x256xf32>
    tpu.vector_store %arg4[%c25, %c0_97], %75 {strides = array<i32>} : memref<26x256xf32, #tpu.memory_space<vmem>>, vector<1x256xf32>,
    %c0_98 = arith.constant 0 : index
    %c0_99 = arith.constant 0 : index
    %77 = vector.load %arg2[%c0_98, %c0_99] : memref<16x26xf32, #tpu.memory_space<vmem>>, vector<16x26xf32>
    %c0_100 = arith.constant 0 : index
    %c0_101 = arith.constant 0 : index
    %78 = vector.load %arg4[%c0_100, %c0_101] : memref<26x256xf32, #tpu.memory_space<vmem>>, vector<26x256xf32>
    %cst_102 = arith.constant dense<0.000000e+00> : vector<16x256xf32>
    %79 = tpu.matmul %77, %78, %cst_102 {dimension_numbers = #tpu.dot_dimension_numbers<[1], [0], [0], [1], [0, 0, 1, 1], [], []>} : vector<16x26xf32>, vector<26x256xf32>, vector<16x256xf32> -> vector<16x256xf32>
    %c0_103 = arith.constant 0 : index
    %c0_104 = arith.constant 0 : index
    %c0_105 = arith.constant 0 : index
    %80 = vector.load %arg3[%c0_103, %c0_104, %c0_105] : memref<1x16x256xf32, #tpu.memory_space<vmem>>, vector<1x16x256xf32>
    %81 = vector.shape_cast %80 : vector<1x16x256xf32> to vector<16x256xf32>
    %82 = vector.shape_cast %79 : vector<16x256xf32> to vector<1x16x256xf32>
    tpu.vector_store %arg3[%c0_103, %c0_104, %c0_105], %82 {strides = array<i32>} : memref<1x16x256xf32, #tpu.memory_space<vmem>>, vector<1x16x256xf32>,
    return
  }
  func.func @transform_0(%arg0: i32) -> (i32, i32, i32) {
    %c0_i32 = arith.constant 0 : i32
    %c0_i32_0 = arith.constant 0 : i32
    %c0_i32_1 = arith.constant 0 : i32
    return %arg0, %c0_i32, %c0_i32_0 : i32, i32, i32
  }
  func.func @transform_1(%arg0: i32) -> (i32, i32) {
    %c0_i32 = arith.constant 0 : i32
    %c0_i32_0 = arith.constant 0 : i32
    %c0_i32_1 = arith.constant 0 : i32
    return %c0_i32, %c0_i32_0 : i32, i32
  }
  func.func @transform_2(%arg0: i32) -> (i32, i32, i32) {
    %c0_i32 = arith.constant 0 : i32
    %c0_i32_0 = arith.constant 0 : i32
    %c0_i32_1 = arith.constant 0 : i32
    return %arg0, %c0_i32, %c0_i32_0 : i32, i32, i32
  }
}

</mosaic_0001>

<llo_original>
// kernel: squeeze.4
$region0: #{squeeze.4}
  %s0 = inlined_call_operand.vmem [shape: f32[16,5,5], index: 0, kind: input, shape index: {}]
  %s1 = inlined_call_operand.vmem [shape: f32[16,25], index: 1, kind: output, shape index: {}]
  %v2 = vld [vmem:[%s0] sm:$0x1f]
  %vm3 = vcmask 130048
  %4 = vst.msk [vmem:[%s1] sm:$0x1f] %vm3, %v2
  %s5 = scalar_lea.vmem %s0, 8
  %v6 = vld [vmem:[%s5] sm:$0x1f]
  %vm7 = vcmask 130048
  %s8 = scalar_lea.vmem %s1, 5
  %9 = vst.msk [vmem:[%s8] sm:$0x1f] %vm7, %v6
  %s10 = scalar_lea.vmem %s0, 16
  %v11 = vld [vmem:[%s10] sm:$0x1f]
  %vm12 = vcmask 130048
  %s13 = scalar_lea.vmem %s1, 10
  %14 = vst.msk [vmem:[%s13] sm:$0x1f] %vm12, %v11
  %s15 = scalar_lea.vmem %s0, 24
  %v16 = vld [vmem:[%s15] sm:$0x1f]
  %vm17 = vcmask 130048
  %s18 = scalar_lea.vmem %s1, 15
  %19 = vst.msk [vmem:[%s18] sm:$0x1f] %vm17, %v16
  %s20 = scalar_lea.vmem %s0, 32
  %v21 = vld [vmem:[%s20] sm:$0x1f]
  %vm22 = vcmask 130048
  %s23 = scalar_lea.vmem %s1, 20
  %24 = vst.msk [vmem:[%s23] sm:$0x1f] %vm22, %v21

// kernel: conv_bn_forward.2
$region0: #{conv_bn_forward.2}
  #allocation0 [shape = 'u32[]', space=smem, size = 0x4, offset = 0x4, fixed_abs, tag = 'smem constant byte address 0x4 - core index']
  #allocation1 [shape = 'u32[144,128]{1,0:T(1,128)}', space=vmem, size = 0x12000, scoped, tag = 'internal scratch']
  #allocation2 [shape = 'f32[26,256]{1,0:T(8,128)}', space=vmem, size = 0x8000, scoped, tag = 'scratch operand']
  %s0 = inlined_call_operand.vmem [shape: f32[2,5,320], index: 0, kind: input, shape index: {}]
  %s1 = inlined_call_operand.vmem [shape: f32[2,26,26], index: 1, kind: output, shape index: {}]
  %s2 = sld [smem:[#allocation0]]
  $region37: #{conv_bn_forward.2} parent=0
    _
  %s4 = ssub.s32 1, %s2
  %s5 = scalar_select 0, %s4, %s2
  loop: start=0, step=1, limit=4
  $region2: #{conv_bn_forward.2} parent=0 // loop_pre_header
    _
  $region3: #{conv_bn_forward.2} parent=0 // loop_header
    %s7 = sphi 0, %s11
    %p8 = scmp.ge.s32.totalorder %s7, 4
    %s17 = sphi 0, %s19
    %s20 = sphi 0, %s17
    %s21 = sphi 0, %s20
    %s37 = sphi 0, %s21
    %s43 = sphi 0, %s45
    %s46 = sphi 0, %s43
    %s47 = sphi 0, %s46
    %s63 = sphi 0, %s47
  $region4: #{conv_bn_forward.2} parent=0 // loop_header_branch
    %10 = sbr.rel (%p8) target = $region8
  $region5: #{conv_bn_forward.2} parent=0 // loop_body
    %s12 = ssub.s32 %s7, 1
    %s13 = ssub.s32 %s7, 2
    %s14 = sadd.s32 %s7, 1
    %s15 = ssub.s32 %s7, %s14
    %p16 = scmp.eq.s32.totalorder %s15, 0
    %s18 = sadd.s32 %s17, 1
    %s19 = scalar_select %p16, %s17, %s18
    %p22 = pneg %p16
    %p23 = scmp.eq.s32.totalorder %s7, 1
    %p24 = por %p22, %p23
    %p25 = scmp.ne.s32.totalorder %s17, %s20
    %p26 = scmp.eq.s32.totalorder %s7, 0
    %p27 = por %p25, %p26
    %p28 = scmp.ne.s32.totalorder %s17, %s20
    %p29 = scmp.eq.s32.totalorder %s12, 1
    %p30 = por %p28, %p29
    %p31 = scmp.ne.s32.totalorder %s20, %s21
    %p32 = scmp.eq.s32.totalorder %s12, 0
    %p33 = por %p31, %p32
    %p34 = scmp.ne.s32.totalorder %s20, %s21
    %p35 = scmp.eq.s32.totalorder %s13, 1
    %p36 = por %p34, %p35
    %p38 = scmp.ne.s32.totalorder %s21, %s37
    %p39 = scmp.eq.s32.totalorder %s13, 0
    %p40 = por %p38, %p39
    %s41 = ssub.s32 %s7, %s14
    %p42 = scmp.eq.s32.totalorder %s41, 0
    %s44 = sadd.s32 %s43, 1
    %s45 = scalar_select %p42, %s43, %s44
    %p48 = pneg %p42
    %p49 = scmp.eq.s32.totalorder %s7, 1
    %p50 = por %p48, %p49
    %p51 = scmp.ne.s32.totalorder %s43, %s46
    %p52 = scmp.eq.s32.totalorder %s7, 0
    %p53 = por %p51, %p52
    %p54 = scmp.ne.s32.totalorder %s43, %s46
    %p55 = scmp.eq.s32.totalorder %s12, 1
    %p56 = por %p54, %p55
    %p57 = scmp.ne.s32.totalorder %s46, %s47
    %p58 = scmp.eq.s32.totalorder %s12, 0
    %p59 = por %p57, %p58
    %p60 = scmp.ne.s32.totalorder %s46, %s47
    %p61 = scmp.eq.s32.totalorder %s13, 1
    %p62 = por %p60, %p61
    %p64 = scmp.ne.s32.totalorder %s47, %s63
    %p65 = scmp.eq.s32.totalorder %s13, 0
    %p66 = por %p64, %p65
    %p67 = scmp.le.s32.totalorder 1, %s7
    %p68 = scmp.lt.s32.totalorder %s7, 3
    %p69 = pnand %p67, %p68
    %p70 = pneg %p69
    // Predicated region
    $region9: #{conv_bn_forward.2} parent=5 // pred_check
      _
    $region10: #{conv_bn_forward.2} parent=5 // pred_check_branch
      %72 = sbr.rel (%p69) target = $region12
    $region11: #{conv_bn_forward.2} parent=5 // pred_region
      %s73 = ssub.s32 %s7, 1
    $region12: #{conv_bn_forward.2} parent=5 // pred_fallthru
      _
    %p74 = scmp.lt.s32.totalorder %s7, 2
    // Predicated region
    $region13: #{conv_bn_forward.2} parent=5 // pred_check
      %p75 = pneg %p74
    $region14: #{conv_bn_forward.2} parent=5 // pred_check_branch
      %77 = sbr.rel (%p75) target = $region16
    $region15: #{conv_bn_forward.2} parent=5 // pred_region
      // Predicated region
      $region17: #{conv_bn_forward.2} parent=15 // pred_check
        %p78 = pneg %p27
      $region18: #{conv_bn_forward.2} parent=15 // pred_check_branch
        %80 = sbr.rel (%p78) target = $region20
      $region19: #{conv_bn_forward.2} parent=15 // pred_region
        %p81 = scmp.lt.s32.totalorder %s7, 1
        %s82 = scalar_select %p81, %s7, 1
        %s83 = smul.addr %s82, 3
        %s84 = smul.addr %s83, 8
        %s85 = scalar_lea.vmem %s0, %s84
      $region20: #{conv_bn_forward.2} parent=15 // pred_fallthru
        _
    $region16: #{conv_bn_forward.2} parent=5 // pred_fallthru
      _
    %p86 = scmp.le.s32.totalorder 1, %s7
    %p87 = scmp.lt.s32.totalorder %s7, 3
    %p88 = pnand %p86, %p87
    %p89 = pneg %p88
    // Predicated region
    $region21: #{conv_bn_forward.2} parent=5 // pred_check
      _
    $region22: #{conv_bn_forward.2} parent=5 // pred_check_branch
      %91 = sbr.rel (%p88) target = $region24
    $region23: #{conv_bn_forward.2} parent=5 // pred_region
      %s92 = ssub.s32 %s7, 1
      %p93 = scmp.lt.s32.totalorder %s12, 1
      %s94 = scalar_select %p93, %s12, 1
      %s95 = smul.addr %s94, 3
      %s96 = smul.addr %s95, 8
      %s97 = scalar_lea.vmem %s0, %s96
      %p98 = pneg %p33
      %p99 = pneg %p30
      %p100 = pneg %p59
      %p101 = pneg %p56
      %p102 = scmp.lt.s32.totalorder %s12, 1
      %s103 = scalar_select %p102, %s12, 1
      %s104 = smul.addr %s103, 4
      %s105 = smul.addr %s104, 8
      %s106 = scalar_lea.vmem %s1, %s105
      %p107 = scmp.lt.s32.totalorder %s12, 1
      %s108 = scalar_select %p107, %s12, 1
      %s109 = smul.addr %s108, 3
      %s110 = smul.addr %s109, 8
      %s111 = scalar_lea.vmem %s0, %s110
      %p112 = scmp.lt.s32.totalorder %s12, 1
      %s113 = scalar_select %p112, %s12, 1
      %s114 = smul.addr %s113, 4
      %s115 = smul.addr %s114, 8
      %s116 = scalar_lea.vmem %s1, %s115
      %v117 = vld [vmem:[%s111] ss:$8 sm:$0x3]
      %v118 = vlaneseq
      %vm119 = vcmp.ge.s32.totalorder %v118, 0
      %vm120 = vcmp.lt.s32.totalorder %v118, 256
      %vm121 = vmand %vm119, %vm120
      %122 = vst.msk [vmem:[#allocation2] ss:$8 sm:$0x3] %vm121, %v117
      %123 = vst.msk [vmem:[#allocation2] ss:$8 sm:$0x0] %vm121, %v117
      %s124 = scalar_lea.vmem %s111, 1
      %v125 = vld [vmem:[%s124] ss:$8 sm:$0x3]
      %s126 = scalar_lea.vmem [#allocation2], 1
      %127 = vst.msk [vmem:[%s126] ss:$8 sm:$0x3] %vm121, %v125
      %128 = vst.msk [vmem:[%s126] ss:$8 sm:$0x0] %vm121, %v125
      %s129 = scalar_lea.vmem %s111, 2
      %v130 = vld [vmem:[%s129] ss:$8 sm:$0x3]
      %s131 = scalar_lea.vmem [#allocation2], 2
      %132 = vst.msk [vmem:[%s131] ss:$8 sm:$0x3] %vm121, %v130
      %133 = vst.msk [vmem:[%s131] ss:$8 sm:$0x0] %vm121, %v130
      %s134 = scalar_lea.vmem %s111, 3
      %v135 = vld [vmem:[%s134] ss:$8 sm:$0x3]
      %s136 = scalar_lea.vmem [#allocation2], 3
      %137 = vst.msk [vmem:[%s136] ss:$8 sm:$0x3] %vm121, %v135
      %138 = vst.msk [vmem:[%s136] ss:$8 sm:$0x0] %vm121, %v135
      %s139 = scalar_lea.vmem %s111, 4
      %v140 = vld [vmem:[%s139] ss:$8 sm:$0x3]
      %s141 = scalar_lea.vmem [#allocation2], 4
      %142 = vst.msk [vmem:[%s141] ss:$8 sm:$0x3] %vm121, %v140
      %143 = vst.msk [vmem:[%s141] ss:$8 sm:$0x0] %vm121, %v140
      %v144 = vld [vmem:[%s111] ss:$8 sm:$0x7]
      %146 = vrot.lane.b32.xlu0 %v144, 112
      %v147 = vpop.permute.xlu0 %146
      %v148 = vrot.slane %v147, 1
      %vm149 = vcmask 916480
      %v150 = vsel %vm149, %v147, %v148
      %s152 = scalar_lea.vmem [#allocation2], 5
      %153 = vst.msk [vmem:[%s152] ss:$8 sm:$0x3] %vm121, %v150
      %154 = vst.msk [vmem:[%s152] ss:$8 sm:$0x0] %vm121, %v150
      %v155 = vld [vmem:[%s124] ss:$8 sm:$0x7]
      %157 = vrot.lane.b32.xlu0 %v155, 112
      %v158 = vpop.permute.xlu0 %157
      %v159 = vrot.slane %v158, 1
      %v160 = vsel %vm149, %v158, %v159
      %s162 = scalar_lea.vmem [#allocation2], 6
      %163 = vst.msk [vmem:[%s162] ss:$8 sm:$0x3] %vm121, %v160
      %164 = vst.msk [vmem:[%s162] ss:$8 sm:$0x0] %vm121, %v160
      %v165 = vld [vmem:[%s129] ss:$8 sm:$0x7]
      %167 = vrot.lane.b32.xlu0 %v165, 112
      %v168 = vpop.permute.xlu0 %167
      %v169 = vrot.slane %v168, 1
      %v170 = vsel %vm149, %v168, %v169
      %s172 = scalar_lea.vmem [#allocation2], 7
      %173 = vst.msk [vmem:[%s172] ss:$8 sm:$0x3] %vm121, %v170
      %174 = vst.msk [vmem:[%s172] ss:$8 sm:$0x0] %vm121, %v170
      %v175 = vld [vmem:[%s134] ss:$8 sm:$0x7]
      %177 = vrot.lane.b32.xlu0 %v175, 112
      %v178 = vpop.permute.xlu0 %177
      %v179 = vrot.slane %v178, 1
      %v180 = vsel %vm149, %v178, %v179
      %s182 = scalar_lea.vmem [#allocation2], 16
      %183 = vst.msk [vmem:[%s182] ss:$8 sm:$0x3] %vm121, %v180
      %184 = vst.msk [vmem:[%s182] ss:$8 sm:$0x0] %vm121, %v180
      %v185 = vld [vmem:[%s139] ss:$8 sm:$0x7]
      %187 = vrot.lane.b32.xlu0 %v185, 112
      %v188 = vpop.permute.xlu0 %187
      %v189 = vrot.slane %v188, 1
      %v190 = vsel %vm149, %v188, %v189
      %s192 = scalar_lea.vmem [#allocation2], 17
      %193 = vst.msk [vmem:[%s192] ss:$8 sm:$0x3] %vm121, %v190
      %194 = vst.msk [vmem:[%s192] ss:$8 sm:$0x0] %vm121, %v190
      %v195 = vld [vmem:[%s111] ss:$8 sm:$0x7]
      %197 = vrot.lane.b32.xlu0 %v195, 96
      %v198 = vpop.permute.xlu0 %197
      %v199 = vrot.slane %v198, 1
      %vm200 = vcmask 785408
      %v201 = vsel %vm200, %v198, %v199
      %s203 = scalar_lea.vmem [#allocation2], 18
      %204 = vst.msk [vmem:[%s203] ss:$8 sm:$0x3] %vm121, %v201
      %205 = vst.msk [vmem:[%s203] ss:$8 sm:$0x0] %vm121, %v201
      %v206 = vld [vmem:[%s124] ss:$8 sm:$0x7]
      %208 = vrot.lane.b32.xlu0 %v206, 96
      %v209 = vpop.permute.xlu0 %208
      %v210 = vrot.slane %v209, 1
      %v211 = vsel %vm200, %v209, %v210
      %s213 = scalar_lea.vmem [#allocation2], 19
      %214 = vst.msk [vmem:[%s213] ss:$8 sm:$0x3] %vm121, %v211
      %215 = vst.msk [vmem:[%s213] ss:$8 sm:$0x0] %vm121, %v211
      %v216 = vld [vmem:[%s129] ss:$8 sm:$0x7]
      %218 = vrot.lane.b32.xlu0 %v216, 96
      %v219 = vpop.permute.xlu0 %218
      %v220 = vrot.slane %v219, 1
      %v221 = vsel %vm200, %v219, %v220
      %s223 = scalar_lea.vmem [#allocation2], 20
      %224 = vst.msk [vmem:[%s223] ss:$8 sm:$0x3] %vm121, %v221
      %225 = vst.msk [vmem:[%s223] ss:$8 sm:$0x0] %vm121, %v221
      %v226 = vld [vmem:[%s134] ss:$8 sm:$0x7]
      %228 = vrot.lane.b32.xlu0 %v226, 96
      %v229 = vpop.permute.xlu0 %228
      %v230 = vrot.slane %v229, 1
      %v231 = vsel %vm200, %v229, %v230
      %s233 = scalar_lea.vmem [#allocation2], 21
      %234 = vst.msk [vmem:[%s233] ss:$8 sm:$0x3] %vm121, %v231
      %235 = vst.msk [vmem:[%s233] ss:$8 sm:$0x0] %vm121, %v231
      %v236 = vld [vmem:[%s139] ss:$8 sm:$0x7]
      %238 = vrot.lane.b32.xlu0 %v236, 96
      %v239 = vpop.permute.xlu0 %238
      %v240 = vrot.slane %v239, 1
      %v241 = vsel %vm200, %v239, %v240
      %s243 = scalar_lea.vmem [#allocation2], 22
      %244 = vst.msk [vmem:[%s243] ss:$8 sm:$0x3] %vm121, %v241
      %245 = vst.msk [vmem:[%s243] ss:$8 sm:$0x0] %vm121, %v241
      %v246 = vld [vmem:[%s111] ss:$8 sm:$0x7]
      %248 = vrot.lane.b32.xlu0 %v246, 80
      %v249 = vpop.permute.xlu0 %248
      %v250 = vrot.slane %v249, 1
      %vm251 = vcmask 654336
      %v252 = vsel %vm251, %v249, %v250
      %s254 = scalar_lea.vmem [#allocation2], 23
      %255 = vst.msk [vmem:[%s254] ss:$8 sm:$0x3] %vm121, %v252
      %256 = vst.msk [vmem:[%s254] ss:$8 sm:$0x0] %vm121, %v252
      %v257 = vld [vmem:[%s124] ss:$8 sm:$0x7]
      %259 = vrot.lane.b32.xlu0 %v257, 80
      %v260 = vpop.permute.xlu0 %259
      %v261 = vrot.slane %v260, 1
      %v262 = vsel %vm251, %v260, %v261
      %s264 = scalar_lea.vmem [#allocation2], 32
      %265 = vst.msk [vmem:[%s264] ss:$8 sm:$0x3] %vm121, %v262
      %266 = vst.msk [vmem:[%s264] ss:$8 sm:$0x0] %vm121, %v262
      %v267 = vld [vmem:[%s129] ss:$8 sm:$0x7]
      %269 = vrot.lane.b32.xlu0 %v267, 80
      %v270 = vpop.permute.xlu0 %269
      %v271 = vrot.slane %v270, 1
      %v272 = vsel %vm251, %v270, %v271
      %s274 = scalar_lea.vmem [#allocation2], 33
      %275 = vst.msk [vmem:[%s274] ss:$8 sm:$0x3] %vm121, %v272
      %276 = vst.msk [vmem:[%s274] ss:$8 sm:$0x0] %vm121, %v272
      %v277 = vld [vmem:[%s134] ss:$8 sm:$0x7]
      %279 = vrot.lane.b32.xlu0 %v277, 80
      %v280 = vpop.permute.xlu0 %279
      %v281 = vrot.slane %v280, 1
      %v282 = vsel %vm251, %v280, %v281
      %s284 = scalar_lea.vmem [#allocation2], 34
      %285 = vst.msk [vmem:[%s284] ss:$8 sm:$0x3] %vm121, %v282
      %286 = vst.msk [vmem:[%s284] ss:$8 sm:$0x0] %vm121, %v282
      %v287 = vld [vmem:[%s139] ss:$8 sm:$0x7]
      %289 = vrot.lane.b32.xlu0 %v287, 80
      %v290 = vpop.permute.xlu0 %289
      %v291 = vrot.slane %v290, 1
      %v292 = vsel %vm251, %v290, %v291
      %s294 = scalar_lea.vmem [#allocation2], 35
      %295 = vst.msk [vmem:[%s294] ss:$8 sm:$0x3] %vm121, %v292
      %296 = vst.msk [vmem:[%s294] ss:$8 sm:$0x0] %vm121, %v292
      %v297 = vld [vmem:[%s111] ss:$8 sm:$0x7]
      %299 = vrot.lane.b32.xlu0 %v297, 64
      %v300 = vpop.permute.xlu0 %299
      %v301 = vrot.slane %v300, 1
      %vm302 = vcmask 523264
      %v303 = vsel %vm302, %v300, %v301
      %s305 = scalar_lea.vmem [#allocation2], 36
      %306 = vst.msk [vmem:[%s305] ss:$8 sm:$0x3] %vm121, %v303
      %307 = vst.msk [vmem:[%s305] ss:$8 sm:$0x0] %vm121, %v303
      %v308 = vld [vmem:[%s124] ss:$8 sm:$0x7]
      %310 = vrot.lane.b32.xlu0 %v308, 64
      %v311 = vpop.permute.xlu0 %310
      %v312 = vrot.slane %v311, 1
      %v313 = vsel %vm302, %v311, %v312
      %s315 = scalar_lea.vmem [#allocation2], 37
      %316 = vst.msk [vmem:[%s315] ss:$8 sm:$0x3] %vm121, %v313
      %317 = vst.msk [vmem:[%s315] ss:$8 sm:$0x0] %vm121, %v313
      %v318 = vld [vmem:[%s129] ss:$8 sm:$0x7]
      %320 = vrot.lane.b32.xlu0 %v318, 64
      %v321 = vpop.permute.xlu0 %320
      %v322 = vrot.slane %v321, 1
      %v323 = vsel %vm302, %v321, %v322
      %s325 = scalar_lea.vmem [#allocation2], 38
      %326 = vst.msk [vmem:[%s325] ss:$8 sm:$0x3] %vm121, %v323
      %327 = vst.msk [vmem:[%s325] ss:$8 sm:$0x0] %vm121, %v323
      %v328 = vld [vmem:[%s134] ss:$8 sm:$0x7]
      %330 = vrot.lane.b32.xlu0 %v328, 64
      %v331 = vpop.permute.xlu0 %330
      %v332 = vrot.slane %v331, 1
      %v333 = vsel %vm302, %v331, %v332
      %s335 = scalar_lea.vmem [#allocation2], 39
      %336 = vst.msk [vmem:[%s335] ss:$8 sm:$0x3] %vm121, %v333
      %337 = vst.msk [vmem:[%s335] ss:$8 sm:$0x0] %vm121, %v333
      %v338 = vld [vmem:[%s139] ss:$8 sm:$0x7]
      %340 = vrot.lane.b32.xlu0 %v338, 64
      %v341 = vpop.permute.xlu0 %340
      %v342 = vrot.slane %v341, 1
      %v343 = vsel %vm302, %v341, %v342
      %s345 = scalar_lea.vmem [#allocation2], 48
      %346 = vst.msk [vmem:[%s345] ss:$8 sm:$0x3] %vm121, %v343
      %347 = vst.msk [vmem:[%s345] ss:$8 sm:$0x0] %vm121, %v343
      %s348 = scalar_lea.vmem [#allocation2], 49
      %349 = vst.msk [vmem:[%s348] ss:$8 sm:$0x3] %vm121, 1.0
      %350 = vst.msk [vmem:[%s348] ss:$8 sm:$0x0] %vm121, 1.0
      %v351 = vld [vmem:[#allocation2] sm:$0xff]
      %v352 = vld [vmem:[#allocation2 + $0x8] sm:$0xff]
      %v353 = vld [vmem:[#allocation2 + $0x10] sm:$0xff]
      %v354 = vld [vmem:[#allocation2 + $0x18] sm:$0xff]
      %v355 = vld [vmem:[#allocation2 + $0x20] sm:$0xff]
      %v356 = vld [vmem:[#allocation2 + $0x28] sm:$0xff]
      %v357 = vld [vmem:[#allocation2 + $0x30] sm:$0x3]
      %v358 = vld [vmem:[#allocation2 + $0x38] sm:$0x3]
      %359 = vmatprep.subr.mxu0 %v352
      %360 = vmatpush1.xpose.msra.mxu0 %v351
      %361 = vmatprep.subr.mxu0 %v354
      %362 = vmatpush1.xpose.msra.mxu0 %v353
      %363 = vmatprep.subr.mxu0 %v356
      %364 = vmatpush1.xpose.msra.mxu0 %v355
      %365 = vmatprep.subr.mxu0 %v358
      %366 = vmatpush1.xpose.msra.mxu0 %v357
      %367 = vmatprep.subr.mxu0 0.0
      %368 = vmatpush1.xpose.msra.mxu0 0.0
      %369 = vmatprep.subr.mxu0 0.0
      %370 = vmatpush1.xpose.msra.mxu0 0.0
      %371 = vmatprep.subr.mxu0 0.0
      %372 = vmatpush1.xpose.msra.mxu0 0.0
      %373 = vmatprep.subr.mxu0 0.0
      %374 = vmatpush1.xpose.msra.mxu0 0.0
      %375 = vmatprep.subr.mxu0 0.0
      %376 = vmatpush1.xpose.msra.mxu0 0.0
      %377 = vmatprep.subr.mxu0 0.0
      %378 = vmatpush1.xpose.msra.mxu0 0.0
      %379 = vmatprep.subr.mxu0 0.0
      %380 = vmatpush1.xpose.msra.mxu0 0.0
      %381 = vmatprep.subr.mxu0 0.0
      %382 = vmatpush1.xpose.msra.mxu0 0.0
      %383 = vmatprep.subr.mxu0 0.0
      %384 = vmatpush1.xpose.msra.mxu0 0.0
      %385 = vmatprep.subr.mxu0 0.0
      %386 = vmatpush1.xpose.msra.mxu0 0.0
      %387 = vmatprep.subr.mxu0 0.0
      %388 = vmatpush1.xpose.msra.mxu0 0.0
      %389 = vmatprep.subr.mxu0 0.0
      %390 = vmatpush1.xpose.msra.mxu0 0.0
      %391 = vmatprep.subr.mxu0 0.0
      %392 = vmatpush1.xpose.msra.mxu0 0.0
      %393 = vmatprep.subr.mxu0 0.0
      %394 = vmatpush1.xpose.msra.mxu0 0.0
      %395 = vmatprep.subr.mxu0 0.0
      %396 = vmatpush1.xpose.msra.mxu0 0.0
      %397 = vmatprep.subr.mxu0 0.0
      %398 = vmatpush1.xpose.msra.mxu0 0.0
      %399 = vmatprep.subr.mxu0 0.0
      %400 = vmatpush1.xpose.msra.mxu0 0.0
      %401 = vmatprep.subr.mxu0 0.0
      %402 = vmatpush1.xpose.msra.mxu0 0.0
      %403 = vmatprep.subr.mxu0 0.0
      %404 = vmatpush1.xpose.msra.mxu0 0.0
      %405 = vmatprep.subr.mxu0 0.0
      %406 = vmatpush1.xpose.msra.mxu0 0.0
      %407 = vmatprep.subr.mxu0 0.0
      %408 = vmatpush1.xpose.msra.mxu0 0.0
      %409 = vmatprep.subr.mxu0 0.0
      %410 = vmatpush1.xpose.msra.mxu0 0.0
      %411 = vmatprep.subr.mxu0 0.0
      %412 = vmatpush1.xpose.msra.mxu0 0.0
      %413 = vmatprep.subr.mxu0 0.0
      %414 = vmatpush1.xpose.msra.mxu0 0.0
      %415 = vmatprep.subr.mxu0 0.0
      %416 = vmatpush1.xpose.msra.mxu0 0.0
      %417 = vmatprep.subr.mxu0 0.0
      %418 = vmatpush1.xpose.msra.mxu0 0.0
      %419 = vmatprep.subr.mxu0 0.0
      %420 = vmatpush1.xpose.msra.mxu0 0.0
      %421 = vmatprep.subr.mxu0 0.0
      %422 = vmatpush1.xpose.msra.mxu0 0.0
      %423 = vmatprep.mubr.f32.mxu0 %v352
      %424 = vmatmul.mubr.f32.gmra.mrb[0].mxu0 %v351
      %v425 = vpop.f32.mrb[0].mxu0
      %v426 = vadd.f32 0.0, %v425
      %v427 = vpop.f32.mrb[0].mxu0
      %428 = vmatprep.mubr.f32.mxu0 %v354
      %429 = vmatmul.mubr.f32.gmra.mrb[0].mxu0 %v353
      %v430 = vpop.f32.mrb[0].mxu0
      %v431 = vadd.f32 0.0, %v430
      %v432 = vpop.f32.mrb[0].mxu0
      %433 = vmatprep.mubr.f32.mxu0 %v356
      %434 = vmatmul.mubr.f32.gmra.mrb[0].mxu0 %v355
      %v435 = vpop.f32.mrb[0].mxu0
      %v436 = vadd.f32 0.0, %v435
      %v437 = vpop.f32.mrb[0].mxu0
      %438 = vmatprep.mubr.f32.mxu0 %v358
      %439 = vmatmul.mubr.f32.gmra.mrb[0].mxu0 %v357
      %v440 = vpop.f32.mrb[0].mxu0
      %v441 = vadd.f32 0.0, %v440
      %v442 = vpop.f32.mrb[0].mxu0
      %443 = vdwg.mxu0
      %vm444 = vcmask 211968
      %445 = vst.msk [vmem:[%s116] sm:$0xff] %vm444, %v426
      %446 = vst.msk [vmem:[%s116 + $0x8] sm:$0xff] %vm444, %v431
      %447 = vst.msk [vmem:[%s116 + $0x10] sm:$0xff] %vm444, %v436
      %vm448 = vcmask 205824
      %449 = vst.msk [vmem:[%s116 + $0x18] sm:$0x3] %vm448, %v441
      %p450 = scmp.lt.s32.totalorder %s12, 1
      %s451 = scalar_select %p450, %s12, 1
      %s452 = smul.addr %s451, 4
      %s453 = smul.addr %s452, 8
      %s454 = scalar_lea.vmem %s1, %s453
      // Predicated region
      $region25: #{conv_bn_forward.2} parent=23 // pred_check
        %p455 = pneg %p56
      $region26: #{conv_bn_forward.2} parent=23 // pred_check_branch
        %457 = sbr.rel (%p455) target = $region28
      $region27: #{conv_bn_forward.2} parent=23 // pred_region
        _
      $region28: #{conv_bn_forward.2} parent=23 // pred_fallthru
        _
    $region24: #{conv_bn_forward.2} parent=5 // pred_fallthru
      _
    %p458 = scmp.le.s32.totalorder 2, %s7
    // Predicated region
    $region29: #{conv_bn_forward.2} parent=5 // pred_check
      %p459 = pneg %p458
    $region30: #{conv_bn_forward.2} parent=5 // pred_check_branch
      %461 = sbr.rel (%p459) target = $region32
    $region31: #{conv_bn_forward.2} parent=5 // pred_region
      %s462 = ssub.s32 %s7, 2
      // Predicated region
      $region33: #{conv_bn_forward.2} parent=31 // pred_check
        %p463 = pneg %p62
      $region34: #{conv_bn_forward.2} parent=31 // pred_check_branch
        %465 = sbr.rel (%p463) target = $region36
      $region35: #{conv_bn_forward.2} parent=31 // pred_region
        %p466 = scmp.lt.s32.totalorder %s13, 1
        %s467 = scalar_select %p466, %s13, 1
        %s468 = smul.addr %s467, 4
        %s469 = smul.addr %s468, 8
        %s470 = scalar_lea.vmem %s1, %s469
      $region36: #{conv_bn_forward.2} parent=31 // pred_fallthru
        _
    $region32: #{conv_bn_forward.2} parent=5 // pred_fallthru
      _
  $region6: #{conv_bn_forward.2} parent=0 // loop_footer
    %s11 = sadd.s32 1, %s7
  $region7: #{conv_bn_forward.2} parent=0 // loop_footer_branch
    %6 = sbr.rel target = $region3
  $region8: #{conv_bn_forward.2} parent=0 // loop_exit
    _

// kernel: conv_bn_forward.3
$region0: #{conv_bn_forward.3}
  #allocation0 [shape = 'u32[]', space=smem, size = 0x4, offset = 0x4, fixed_abs, tag = 'smem constant byte address 0x4 - core index']
  #allocation1 [shape = 'u32[144,128]{1,0:T(1,128)}', space=vmem, size = 0x12000, scoped, tag = 'internal scratch']
  #allocation2 [shape = 'f32[26,256]{1,0:T(8,128)}', space=vmem, size = 0x8000, scoped, tag = 'scratch operand']
  %s0 = inlined_call_operand.vmem [shape: f32[2,5,320], index: 0, kind: input, shape index: {}]
  %s1 = inlined_call_operand.vmem [shape: f32[16,26], index: 1, kind: input, shape index: {}]
  %s2 = inlined_call_operand.vmem [shape: f32[2,16,256], index: 2, kind: output, shape index: {}]
  %s3 = sld [smem:[#allocation0]]
  $region41: #{conv_bn_forward.3} parent=0
    _
  %s5 = ssub.s32 1, %s3
  %s6 = scalar_select 0, %s5, %s3
  loop: start=0, step=1, limit=4
  $region2: #{conv_bn_forward.3} parent=0 // loop_pre_header
    _
  $region3: #{conv_bn_forward.3} parent=0 // loop_header
    %s8 = sphi 0, %s12
    %p9 = scmp.ge.s32.totalorder %s8, 4
    %s18 = sphi 0, %s20
    %s21 = sphi 0, %s18
    %s22 = sphi 0, %s21
    %s38 = sphi 0, %s22
    %s42 = sphi 0, %s42
    %s44 = sphi 0, %s42
    %s45 = sphi 0, %s44
    %s59 = sphi 0, %s45
    %s65 = sphi 0, %s67
    %s68 = sphi 0, %s65
    %s69 = sphi 0, %s68
    %s85 = sphi 0, %s69
  $region4: #{conv_bn_forward.3} parent=0 // loop_header_branch
    %11 = sbr.rel (%p9) target = $region8
  $region5: #{conv_bn_forward.3} parent=0 // loop_body
    %s13 = ssub.s32 %s8, 1
    %s14 = ssub.s32 %s8, 2
    %s15 = sadd.s32 %s8, 1
    %s16 = ssub.s32 %s8, %s15
    %p17 = scmp.eq.s32.totalorder %s16, 0
    %s19 = sadd.s32 %s18, 1
    %s20 = scalar_select %p17, %s18, %s19
    %p23 = pneg %p17
    %p24 = scmp.eq.s32.totalorder %s8, 1
    %p25 = por %p23, %p24
    %p26 = scmp.ne.s32.totalorder %s18, %s21
    %p27 = scmp.eq.s32.totalorder %s8, 0
    %p28 = por %p26, %p27
    %p29 = scmp.ne.s32.totalorder %s18, %s21
    %p30 = scmp.eq.s32.totalorder %s13, 1
    %p31 = por %p29, %p30
    %p32 = scmp.ne.s32.totalorder %s21, %s22
    %p33 = scmp.eq.s32.totalorder %s13, 0
    %p34 = por %p32, %p33
    %p35 = scmp.ne.s32.totalorder %s21, %s22
    %p36 = scmp.eq.s32.totalorder %s14, 1
    %p37 = por %p35, %p36
    %p39 = scmp.ne.s32.totalorder %s22, %s38
    %p40 = scmp.eq.s32.totalorder %s14, 0
    %p41 = por %p39, %p40
    %s43 = sadd.s32 %s42, 1
    %p46 = scmp.eq.s32.totalorder %s8, 1
    %p47 = scmp.ne.s32.totalorder %s42, %s44
    %p48 = scmp.eq.s32.totalorder %s8, 0
    %p49 = por %p47, %p48
    %p50 = scmp.ne.s32.totalorder %s42, %s44
    %p51 = scmp.eq.s32.totalorder %s13, 1
    %p52 = por %p50, %p51
    %p53 = scmp.ne.s32.totalorder %s44, %s45
    %p54 = scmp.eq.s32.totalorder %s13, 0
    %p55 = por %p53, %p54
    %p56 = scmp.ne.s32.totalorder %s44, %s45
    %p57 = scmp.eq.s32.totalorder %s14, 1
    %p58 = por %p56, %p57
    %p60 = scmp.ne.s32.totalorder %s45, %s59
    %p61 = scmp.eq.s32.totalorder %s14, 0
    %p62 = por %p60, %p61
    %s63 = ssub.s32 %s8, %s15
    %p64 = scmp.eq.s32.totalorder %s63, 0
    %s66 = sadd.s32 %s65, 1
    %s67 = scalar_select %p64, %s65, %s66
    %p70 = pneg %p64
    %p71 = scmp.eq.s32.totalorder %s8, 1
    %p72 = por %p70, %p71
    %p73 = scmp.ne.s32.totalorder %s65, %s68
    %p74 = scmp.eq.s32.totalorder %s8, 0
    %p75 = por %p73, %p74
    %p76 = scmp.ne.s32.totalorder %s65, %s68
    %p77 = scmp.eq.s32.totalorder %s13, 1
    %p78 = por %p76, %p77
    %p79 = scmp.ne.s32.totalorder %s68, %s69
    %p80 = scmp.eq.s32.totalorder %s13, 0
    %p81 = por %p79, %p80
    %p82 = scmp.ne.s32.totalorder %s68, %s69
    %p83 = scmp.eq.s32.totalorder %s14, 1
    %p84 = por %p82, %p83
    %p86 = scmp.ne.s32.totalorder %s69, %s85
    %p87 = scmp.eq.s32.totalorder %s14, 0
    %p88 = por %p86, %p87
    %p89 = scmp.le.s32.totalorder 1, %s8
    %p90 = scmp.lt.s32.totalorder %s8, 3
    %p91 = pnand %p89, %p90
    %p92 = pneg %p91
    // Predicated region
    $region9: #{conv_bn_forward.3} parent=5 // pred_check
      _
    $region10: #{conv_bn_forward.3} parent=5 // pred_check_branch
      %94 = sbr.rel (%p91) target = $region12
    $region11: #{conv_bn_forward.3} parent=5 // pred_region
      %s95 = ssub.s32 %s8, 1
      // Predicated region
      $region13: #{conv_bn_forward.3} parent=11 // pred_check
        %p96 = pneg %p55
      $region14: #{conv_bn_forward.3} parent=11 // pred_check_branch
        %98 = sbr.rel (%p96) target = $region16
      $region15: #{conv_bn_forward.3} parent=11 // pred_region
        _
      $region16: #{conv_bn_forward.3} parent=11 // pred_fallthru
        _
    $region12: #{conv_bn_forward.3} parent=5 // pred_fallthru
      _
    %p99 = scmp.lt.s32.totalorder %s8, 2
    // Predicated region
    $region17: #{conv_bn_forward.3} parent=5 // pred_check
      %p100 = pneg %p99
    $region18: #{conv_bn_forward.3} parent=5 // pred_check_branch
      %102 = sbr.rel (%p100) target = $region20
    $region19: #{conv_bn_forward.3} parent=5 // pred_region
      // Predicated region
      $region21: #{conv_bn_forward.3} parent=19 // pred_check
        %p103 = pneg %p28
      $region22: #{conv_bn_forward.3} parent=19 // pred_check_branch
        %105 = sbr.rel (%p103) target = $region24
      $region23: #{conv_bn_forward.3} parent=19 // pred_region
        %p106 = scmp.lt.s32.totalorder %s8, 1
        %s107 = scalar_select %p106, %s8, 1
        %s108 = smul.addr %s107, 3
        %s109 = smul.addr %s108, 8
        %s110 = scalar_lea.vmem %s0, %s109
      $region24: #{conv_bn_forward.3} parent=19 // pred_fallthru
        _
    $region20: #{conv_bn_forward.3} parent=5 // pred_fallthru
      _
    %p111 = scmp.le.s32.totalorder 1, %s8
    %p112 = scmp.lt.s32.totalorder %s8, 3
    %p113 = pnand %p111, %p112
    %p114 = pneg %p113
    // Predicated region
    $region25: #{conv_bn_forward.3} parent=5 // pred_check
      _
    $region26: #{conv_bn_forward.3} parent=5 // pred_check_branch
      %116 = sbr.rel (%p113) target = $region28
    $region27: #{conv_bn_forward.3} parent=5 // pred_region
      %s117 = ssub.s32 %s8, 1
      %p118 = scmp.lt.s32.totalorder %s13, 1
      %s119 = scalar_select %p118, %s13, 1
      %s120 = smul.addr %s119, 3
      %s121 = smul.addr %s120, 8
      %s122 = scalar_lea.vmem %s0, %s121
      %p123 = pneg %p34
      %p124 = pneg %p31
      %p125 = pneg %p55
      %p126 = pneg %p52
      %p127 = pneg %p81
      %p128 = pneg %p78
      %p129 = scmp.lt.s32.totalorder %s13, 1
      %s130 = scalar_select %p129, %s13, 1
      %s131 = smul.addr %s130, 4
      %s132 = smul.addr %s131, 8
      %s133 = scalar_lea.vmem %s2, %s132
      %p134 = scmp.lt.s32.totalorder %s13, 1
      %s135 = scalar_select %p134, %s13, 1
      %s136 = smul.addr %s135, 3
      %s137 = smul.addr %s136, 8
      %s138 = scalar_lea.vmem %s0, %s137
      %p139 = scmp.lt.s32.totalorder %s13, 1
      %s140 = scalar_select %p139, %s13, 1
      %s141 = smul.addr %s140, 4
      %s142 = smul.addr %s141, 8
      %s143 = scalar_lea.vmem %s2, %s142
      %v144 = vld [vmem:[%s138] ss:$8 sm:$0x3]
      %v145 = vlaneseq
      %vm146 = vcmp.ge.s32.totalorder %v145, 0
      %vm147 = vcmp.lt.s32.totalorder %v145, 256
      %vm148 = vmand %vm146, %vm147
      %149 = vst.msk [vmem:[#allocation2] ss:$8 sm:$0x3] %vm148, %v144
      %150 = vst.msk [vmem:[#allocation2] ss:$8 sm:$0x0] %vm148, %v144
      %s151 = scalar_lea.vmem %s138, 1
      %v152 = vld [vmem:[%s151] ss:$8 sm:$0x3]
      %s153 = scalar_lea.vmem [#allocation2], 1
      %154 = vst.msk [vmem:[%s153] ss:$8 sm:$0x3] %vm148, %v152
      %155 = vst.msk [vmem:[%s153] ss:$8 sm:$0x0] %vm148, %v152
      %s156 = scalar_lea.vmem %s138, 2
      %v157 = vld [vmem:[%s156] ss:$8 sm:$0x3]
      %s158 = scalar_lea.vmem [#allocation2], 2
      %159 = vst.msk [vmem:[%s158] ss:$8 sm:$0x3] %vm148, %v157
      %160 = vst.msk [vmem:[%s158] ss:$8 sm:$0x0] %vm148, %v157
      %s161 = scalar_lea.vmem %s138, 3
      %v162 = vld [vmem:[%s161] ss:$8 sm:$0x3]
      %s163 = scalar_lea.vmem [#allocation2], 3
      %164 = vst.msk [vmem:[%s163] ss:$8 sm:$0x3] %vm148, %v162
      %165 = vst.msk [vmem:[%s163] ss:$8 sm:$0x0] %vm148, %v162
      %s166 = scalar_lea.vmem %s138, 4
      %v167 = vld [vmem:[%s166] ss:$8 sm:$0x3]
      %s168 = scalar_lea.vmem [#allocation2], 4
      %169 = vst.msk [vmem:[%s168] ss:$8 sm:$0x3] %vm148, %v167
      %170 = vst.msk [vmem:[%s168] ss:$8 sm:$0x0] %vm148, %v167
      %v171 = vld [vmem:[%s138] ss:$8 sm:$0x7]
      %173 = vrot.lane.b32.xlu0 %v171, 112
      %v174 = vpop.permute.xlu0 %173
      %v175 = vrot.slane %v174, 1
      %vm176 = vcmask 916480
      %v177 = vsel %vm176, %v174, %v175
      %s179 = scalar_lea.vmem [#allocation2], 5
      %180 = vst.msk [vmem:[%s179] ss:$8 sm:$0x3] %vm148, %v177
      %181 = vst.msk [vmem:[%s179] ss:$8 sm:$0x0] %vm148, %v177
      %v182 = vld [vmem:[%s151] ss:$8 sm:$0x7]
      %184 = vrot.lane.b32.xlu0 %v182, 112
      %v185 = vpop.permute.xlu0 %184
      %v186 = vrot.slane %v185, 1
      %v187 = vsel %vm176, %v185, %v186
      %s189 = scalar_lea.vmem [#allocation2], 6
      %190 = vst.msk [vmem:[%s189] ss:$8 sm:$0x3] %vm148, %v187
      %191 = vst.msk [vmem:[%s189] ss:$8 sm:$0x0] %vm148, %v187
      %v192 = vld [vmem:[%s156] ss:$8 sm:$0x7]
      %194 = vrot.lane.b32.xlu0 %v192, 112
      %v195 = vpop.permute.xlu0 %194
      %v196 = vrot.slane %v195, 1
      %v197 = vsel %vm176, %v195, %v196
      %s199 = scalar_lea.vmem [#allocation2], 7
      %200 = vst.msk [vmem:[%s199] ss:$8 sm:$0x3] %vm148, %v197
      %201 = vst.msk [vmem:[%s199] ss:$8 sm:$0x0] %vm148, %v197
      %v202 = vld [vmem:[%s161] ss:$8 sm:$0x7]
      %204 = vrot.lane.b32.xlu0 %v202, 112
      %v205 = vpop.permute.xlu0 %204
      %v206 = vrot.slane %v205, 1
      %v207 = vsel %vm176, %v205, %v206
      %s209 = scalar_lea.vmem [#allocation2], 16
      %210 = vst.msk [vmem:[%s209] ss:$8 sm:$0x3] %vm148, %v207
      %211 = vst.msk [vmem:[%s209] ss:$8 sm:$0x0] %vm148, %v207
      %v212 = vld [vmem:[%s166] ss:$8 sm:$0x7]
      %214 = vrot.lane.b32.xlu0 %v212, 112
      %v215 = vpop.permute.xlu0 %214
      %v216 = vrot.slane %v215, 1
      %v217 = vsel %vm176, %v215, %v216
      %s219 = scalar_lea.vmem [#allocation2], 17
      %220 = vst.msk [vmem:[%s219] ss:$8 sm:$0x3] %vm148, %v217
      %221 = vst.msk [vmem:[%s219] ss:$8 sm:$0x0] %vm148, %v217
      %v222 = vld [vmem:[%s138] ss:$8 sm:$0x7]
      %224 = vrot.lane.b32.xlu0 %v222, 96
      %v225 = vpop.permute.xlu0 %224
      %v226 = vrot.slane %v225, 1
      %vm227 = vcmask 785408
      %v228 = vsel %vm227, %v225, %v226
      %s230 = scalar_lea.vmem [#allocation2], 18
      %231 = vst.msk [vmem:[%s230] ss:$8 sm:$0x3] %vm148, %v228
      %232 = vst.msk [vmem:[%s230] ss:$8 sm:$0x0] %vm148, %v228
      %v233 = vld [vmem:[%s151] ss:$8 sm:$0x7]
      %235 = vrot.lane.b32.xlu0 %v233, 96
      %v236 = vpop.permute.xlu0 %235
      %v237 = vrot.slane %v236, 1
      %v238 = vsel %vm227, %v236, %v237
      %s240 = scalar_lea.vmem [#allocation2], 19
      %241 = vst.msk [vmem:[%s240] ss:$8 sm:$0x3] %vm148, %v238
      %242 = vst.msk [vmem:[%s240] ss:$8 sm:$0x0] %vm148, %v238
      %v243 = vld [vmem:[%s156] ss:$8 sm:$0x7]
      %245 = vrot.lane.b32.xlu0 %v243, 96
      %v246 = vpop.permute.xlu0 %245
      %v247 = vrot.slane %v246, 1
      %v248 = vsel %vm227, %v246, %v247
      %s250 = scalar_lea.vmem [#allocation2], 20
      %251 = vst.msk [vmem:[%s250] ss:$8 sm:$0x3] %vm148, %v248
      %252 = vst.msk [vmem:[%s250] ss:$8 sm:$0x0] %vm148, %v248
      %v253 = vld [vmem:[%s161] ss:$8 sm:$0x7]
      %255 = vrot.lane.b32.xlu0 %v253, 96
      %v256 = vpop.permute.xlu0 %255
      %v257 = vrot.slane %v256, 1
      %v258 = vsel %vm227, %v256, %v257
      %s260 = scalar_lea.vmem [#allocation2], 21
      %261 = vst.msk [vmem:[%s260] ss:$8 sm:$0x3] %vm148, %v258
      %262 = vst.msk [vmem:[%s260] ss:$8 sm:$0x0] %vm148, %v258
      %v263 = vld [vmem:[%s166] ss:$8 sm:$0x7]
      %265 = vrot.lane.b32.xlu0 %v263, 96
      %v266 = vpop.permute.xlu0 %265
      %v267 = vrot.slane %v266, 1
      %v268 = vsel %vm227, %v266, %v267
      %s270 = scalar_lea.vmem [#allocation2], 22
      %271 = vst.msk [vmem:[%s270] ss:$8 sm:$0x3] %vm148, %v268
      %272 = vst.msk [vmem:[%s270] ss:$8 sm:$0x0] %vm148, %v268
      %v273 = vld [vmem:[%s138] ss:$8 sm:$0x7]
      %275 = vrot.lane.b32.xlu0 %v273, 80
      %v276 = vpop.permute.xlu0 %275
      %v277 = vrot.slane %v276, 1
      %vm278 = vcmask 654336
      %v279 = vsel %vm278, %v276, %v277
      %s281 = scalar_lea.vmem [#allocation2], 23
      %282 = vst.msk [vmem:[%s281] ss:$8 sm:$0x3] %vm148, %v279
      %283 = vst.msk [vmem:[%s281] ss:$8 sm:$0x0] %vm148, %v279
      %v284 = vld [vmem:[%s151] ss:$8 sm:$0x7]
      %286 = vrot.lane.b32.xlu0 %v284, 80
      %v287 = vpop.permute.xlu0 %286
      %v288 = vrot.slane %v287, 1
      %v289 = vsel %vm278, %v287, %v288
      %s291 = scalar_lea.vmem [#allocation2], 32
      %292 = vst.msk [vmem:[%s291] ss:$8 sm:$0x3] %vm148, %v289
      %293 = vst.msk [vmem:[%s291] ss:$8 sm:$0x0] %vm148, %v289
      %v294 = vld [vmem:[%s156] ss:$8 sm:$0x7]
      %296 = vrot.lane.b32.xlu0 %v294, 80
      %v297 = vpop.permute.xlu0 %296
      %v298 = vrot.slane %v297, 1
      %v299 = vsel %vm278, %v297, %v298
      %s301 = scalar_lea.vmem [#allocation2], 33
      %302 = vst.msk [vmem:[%s301] ss:$8 sm:$0x3] %vm148, %v299
      %303 = vst.msk [vmem:[%s301] ss:$8 sm:$0x0] %vm148, %v299
      %v304 = vld [vmem:[%s161] ss:$8 sm:$0x7]
      %306 = vrot.lane.b32.xlu0 %v304, 80
      %v307 = vpop.permute.xlu0 %306
      %v308 = vrot.slane %v307, 1
      %v309 = vsel %vm278, %v307, %v308
      %s311 = scalar_lea.vmem [#allocation2], 34
      %312 = vst.msk [vmem:[%s311] ss:$8 sm:$0x3] %vm148, %v309
      %313 = vst.msk [vmem:[%s311] ss:$8 sm:$0x0] %vm148, %v309
      %v314 = vld [vmem:[%s166] ss:$8 sm:$0x7]
      %316 = vrot.lane.b32.xlu0 %v314, 80
      %v317 = vpop.permute.xlu0 %316
      %v318 = vrot.slane %v317, 1
      %v319 = vsel %vm278, %v317, %v318
      %s321 = scalar_lea.vmem [#allocation2], 35
      %322 = vst.msk [vmem:[%s321] ss:$8 sm:$0x3] %vm148, %v319
      %323 = vst.msk [vmem:[%s321] ss:$8 sm:$0x0] %vm148, %v319
      %v324 = vld [vmem:[%s138] ss:$8 sm:$0x7]
      %326 = vrot.lane.b32.xlu0 %v324, 64
      %v327 = vpop.permute.xlu0 %326
      %v328 = vrot.slane %v327, 1
      %vm329 = vcmask 523264
      %v330 = vsel %vm329, %v327, %v328
      %s332 = scalar_lea.vmem [#allocation2], 36
      %333 = vst.msk [vmem:[%s332] ss:$8 sm:$0x3] %vm148, %v330
      %334 = vst.msk [vmem:[%s332] ss:$8 sm:$0x0] %vm148, %v330
      %v335 = vld [vmem:[%s151] ss:$8 sm:$0x7]
      %337 = vrot.lane.b32.xlu0 %v335, 64
      %v338 = vpop.permute.xlu0 %337
      %v339 = vrot.slane %v338, 1
      %v340 = vsel %vm329, %v338, %v339
      %s342 = scalar_lea.vmem [#allocation2], 37
      %343 = vst.msk [vmem:[%s342] ss:$8 sm:$0x3] %vm148, %v340
      %344 = vst.msk [vmem:[%s342] ss:$8 sm:$0x0] %vm148, %v340
      %v345 = vld [vmem:[%s156] ss:$8 sm:$0x7]
      %347 = vrot.lane.b32.xlu0 %v345, 64
      %v348 = vpop.permute.xlu0 %347
      %v349 = vrot.slane %v348, 1
      %v350 = vsel %vm329, %v348, %v349
      %s352 = scalar_lea.vmem [#allocation2], 38
      %353 = vst.msk [vmem:[%s352] ss:$8 sm:$0x3] %vm148, %v350
      %354 = vst.msk [vmem:[%s352] ss:$8 sm:$0x0] %vm148, %v350
      %v355 = vld [vmem:[%s161] ss:$8 sm:$0x7]
      %357 = vrot.lane.b32.xlu0 %v355, 64
      %v358 = vpop.permute.xlu0 %357
      %v359 = vrot.slane %v358, 1
      %v360 = vsel %vm329, %v358, %v359
      %s362 = scalar_lea.vmem [#allocation2], 39
      %363 = vst.msk [vmem:[%s362] ss:$8 sm:$0x3] %vm148, %v360
      %364 = vst.msk [vmem:[%s362] ss:$8 sm:$0x0] %vm148, %v360
      %v365 = vld [vmem:[%s166] ss:$8 sm:$0x7]
      %367 = vrot.lane.b32.xlu0 %v365, 64
      %v368 = vpop.permute.xlu0 %367
      %v369 = vrot.slane %v368, 1
      %v370 = vsel %vm329, %v368, %v369
      %s372 = scalar_lea.vmem [#allocation2], 48
      %373 = vst.msk [vmem:[%s372] ss:$8 sm:$0x3] %vm148, %v370
      %374 = vst.msk [vmem:[%s372] ss:$8 sm:$0x0] %vm148, %v370
      %s375 = scalar_lea.vmem [#allocation2], 49
      %376 = vst.msk [vmem:[%s375] ss:$8 sm:$0x3] %vm148, 1.0
      %377 = vst.msk [vmem:[%s375] ss:$8 sm:$0x0] %vm148, 1.0
      %v378 = vld [vmem:[%s1] sm:$0xff]
      %v379 = vld [vmem:[%s1 + $0x8] sm:$0xff]
      %v380 = vld [vmem:[#allocation2] sm:$0xff]
      %v381 = vld [vmem:[#allocation2 + $0x8] sm:$0xff]
      %v382 = vld [vmem:[#allocation2 + $0x10] sm:$0xff]
      %v383 = vld [vmem:[#allocation2 + $0x18] sm:$0xff]
      %v384 = vld [vmem:[#allocation2 + $0x20] sm:$0xff]
      %v385 = vld [vmem:[#allocation2 + $0x28] sm:$0xff]
      %v386 = vld [vmem:[#allocation2 + $0x30] sm:$0x3]
      %v387 = vld [vmem:[#allocation2 + $0x38] sm:$0x3]
      %vm388 = vcmask 211968
      %v390 = vsel %vm388, %v378, 0
      %v393 = vsel %vm388, %v379, 0
      %vm395 = vcmask 1041408
      %v397 = vsel %vm395, %v386, 0
      %v400 = vsel %vm395, %v387, 0
      %402 = vmatprep.subr.mxu0 %v381
      %403 = vmatpush1.msra.mxu0 %v380
      %404 = vmatprep.subr.mxu0 %v383
      %405 = vmatpush1.msra.mxu0 %v382
      %406 = vmatprep.subr.mxu0 %v385
      %407 = vmatpush1.msra.mxu0 %v384
      %408 = vmatprep.subr.mxu0 %v400
      %409 = vmatpush1.msra.mxu0 %v397
      %410 = vmatprep.subr.mxu0 0.0
      %411 = vmatpush1.msra.mxu0 0.0
      %412 = vmatprep.subr.mxu0 0.0
      %413 = vmatpush1.msra.mxu0 0.0
      %414 = vmatprep.subr.mxu0 0.0
      %415 = vmatpush1.msra.mxu0 0.0
      %416 = vmatprep.subr.mxu0 0.0
      %417 = vmatpush1.msra.mxu0 0.0
      %418 = vmatprep.subr.mxu0 0.0
      %419 = vmatpush1.msra.mxu0 0.0
      %420 = vmatprep.subr.mxu0 0.0
      %421 = vmatpush1.msra.mxu0 0.0
      %422 = vmatprep.subr.mxu0 0.0
      %423 = vmatpush1.msra.mxu0 0.0
      %424 = vmatprep.subr.mxu0 0.0
      %425 = vmatpush1.msra.mxu0 0.0
      %426 = vmatprep.subr.mxu0 0.0
      %427 = vmatpush1.msra.mxu0 0.0
      %428 = vmatprep.subr.mxu0 0.0
      %429 = vmatpush1.msra.mxu0 0.0
      %430 = vmatprep.subr.mxu0 0.0
      %431 = vmatpush1.msra.mxu0 0.0
      %432 = vmatprep.subr.mxu0 0.0
      %433 = vmatpush1.msra.mxu0 0.0
      %434 = vmatprep.subr.mxu0 0.0
      %435 = vmatpush1.msra.mxu0 0.0
      %436 = vmatprep.subr.mxu0 0.0
      %437 = vmatpush1.msra.mxu0 0.0
      %438 = vmatprep.subr.mxu0 0.0
      %439 = vmatpush1.msra.mxu0 0.0
      %440 = vmatprep.subr.mxu0 0.0
      %441 = vmatpush1.msra.mxu0 0.0
      %442 = vmatprep.subr.mxu0 0.0
      %443 = vmatpush1.msra.mxu0 0.0
      %444 = vmatprep.subr.mxu0 0.0
      %445 = vmatpush1.msra.mxu0 0.0
      %446 = vmatprep.subr.mxu0 0.0
      %447 = vmatpush1.msra.mxu0 0.0
      %448 = vmatprep.subr.mxu0 0.0
      %449 = vmatpush1.msra.mxu0 0.0
      %450 = vmatprep.subr.mxu0 0.0
      %451 = vmatpush1.msra.mxu0 0.0
      %452 = vmatprep.subr.mxu0 0.0
      %453 = vmatpush1.msra.mxu0 0.0
      %454 = vmatprep.subr.mxu0 0.0
      %455 = vmatpush1.msra.mxu0 0.0
      %456 = vmatprep.subr.mxu0 0.0
      %457 = vmatpush1.msra.mxu0 0.0
      %458 = vmatprep.subr.mxu0 0.0
      %459 = vmatpush1.msra.mxu0 0.0
      %460 = vmatprep.subr.mxu0 0.0
      %461 = vmatpush1.msra.mxu0 0.0
      %462 = vmatprep.subr.mxu0 0.0
      %463 = vmatpush1.msra.mxu0 0.0
      %464 = vmatprep.subr.mxu0 0.0
      %465 = vmatpush1.msra.mxu0 0.0
      %466 = vmatprep.mubr.f32.mxu0 0.0
      %467 = vmatmul.mubr.f32.gmra.mrb[0].mxu0 %v390
      %v468 = vpop.f32.mrb[0].mxu0
      %v469 = vadd.f32 0.0, %v468
      %v470 = vpop.f32.mrb[0].mxu0
      %v471 = vadd.f32 0.0, %v470
      %472 = vmatprep.mubr.f32.mxu0 0.0
      %473 = vmatmul.mubr.f32.gmra.mrb[0].mxu0 %v393
      %v474 = vpop.f32.mrb[0].mxu0
      %v475 = vadd.f32 0.0, %v474
      %v476 = vpop.f32.mrb[0].mxu0
      %v477 = vadd.f32 0.0, %v476
      %478 = vdwg.mxu0
      %479 = vst [vmem:[%s143] sm:$0xff] %v469
      %480 = vst [vmem:[%s143 + $0x8] sm:$0xff] %v471
      %481 = vst [vmem:[%s143 + $0x10] sm:$0xff] %v475
      %482 = vst [vmem:[%s143 + $0x18] sm:$0xff] %v477
      %p483 = scmp.lt.s32.totalorder %s13, 1
      %s484 = scalar_select %p483, %s13, 1
      %s485 = smul.addr %s484, 4
      %s486 = smul.addr %s485, 8
      %s487 = scalar_lea.vmem %s2, %s486
      // Predicated region
      $region29: #{conv_bn_forward.3} parent=27 // pred_check
        %p488 = pneg %p78
      $region30: #{conv_bn_forward.3} parent=27 // pred_check_branch
        %490 = sbr.rel (%p488) target = $region32
      $region31: #{conv_bn_forward.3} parent=27 // pred_region
        _
      $region32: #{conv_bn_forward.3} parent=27 // pred_fallthru
        _
    $region28: #{conv_bn_forward.3} parent=5 // pred_fallthru
      _
    %p491 = scmp.le.s32.totalorder 2, %s8
    // Predicated region
    $region33: #{conv_bn_forward.3} parent=5 // pred_check
      %p492 = pneg %p491
    $region34: #{conv_bn_forward.3} parent=5 // pred_check_branch
      %494 = sbr.rel (%p492) target = $region36
    $region35: #{conv_bn_forward.3} parent=5 // pred_region
      %s495 = ssub.s32 %s8, 2
      // Predicated region
      $region37: #{conv_bn_forward.3} parent=35 // pred_check
        %p496 = pneg %p84
      $region38: #{conv_bn_forward.3} parent=35 // pred_check_branch
        %498 = sbr.rel (%p496) target = $region40
      $region39: #{conv_bn_forward.3} parent=35 // pred_region
        %p499 = scmp.lt.s32.totalorder %s14, 1
        %s500 = scalar_select %p499, %s14, 1
        %s501 = smul.addr %s500, 4
        %s502 = smul.addr %s501, 8
        %s503 = scalar_lea.vmem %s2, %s502
      $region40: #{conv_bn_forward.3} parent=35 // pred_fallthru
        _
    $region36: #{conv_bn_forward.3} parent=5 // pred_fallthru
      _
  $region6: #{conv_bn_forward.3} parent=0 // loop_footer
    %s12 = sadd.s32 1, %s8
  $region7: #{conv_bn_forward.3} parent=0 // loop_footer_branch
    %7 = sbr.rel target = $region3
  $region8: #{conv_bn_forward.3} parent=0 // loop_exit
    _

</llo_original>
